<compile_context>
chip_gen: v6e
topology: v6e:2x2x1
jax: 0.10.0
libtpu: 0.0.40
codegen_flags: <defaults>
</compile_context>

<pallas_src>
import functools

import jax
import jax.numpy as jnp
from jax.experimental import pallas as pl
from jax.experimental.pallas import tpu as pltpu


def _round_up(a, m):
    return (a + m - 1) // m * m


def _cdiv(a, m):
    return -(-a // m)


def init_params(key, in_in, hidden, out_out):
    """Deterministic init mimicking nn.Linear's U(-1/sqrt(fan_in), 1/sqrt(fan_in)).
    Weights are stored (in_features, out_features) so y = x @ W + b."""
    dims = [in_in] + list(hidden) + [out_out]
    params = []
    keys = jax.random.split(key, 2 * (len(dims) - 1))
    for li, (fi, fo) in enumerate(zip(dims[:-1], dims[1:])):
        bound = 1.0 / (fi ** 0.5)
        w = jax.random.uniform(keys[2 * li], (fi, fo), jnp.float32, -bound, bound)
        b = jax.random.uniform(keys[2 * li + 1], (1, fo), jnp.float32, -bound, bound)
        params += [w, b]
    return tuple(params)


def pack_params(params, pack):
    """One-time weight preprocessing: block-diagonal (lane-dense) bf16 weight slab +
    tiled f32 bias slab.  y_packed = x_packed @ kron(I_pack, W) + tile(b, pack) is
    exactly `pack` independent rows of the original GEMM laid out along lanes."""
    w0, b0, w1, b1, w2, b2 = params
    in_in, h0 = w0.shape
    _, h1 = w1.shape
    _, out_out = w2.shape

    eye = jnp.eye(pack, dtype=jnp.float32)
    bd = lambda w: jnp.kron(eye, w.astype(jnp.float32))        # (pack*fi, pack*fo)
    W0, W1, W2 = bd(w0), bd(w1), bd(w2)

    K = max(W0.shape[0], W1.shape[0], W2.shape[0])             # 512
    padr = lambda w: jnp.pad(w, ((0, K - w.shape[0]), (0, 0)))
    w_all = jnp.concatenate([padr(W0), padr(W1), padr(W2)], axis=1).astype(jnp.bfloat16)

    N = max(W0.shape[1], W1.shape[1], W2.shape[1])             # 512
    tile1 = lambda b: jnp.tile(jnp.reshape(b, (1, -1)).astype(jnp.float32), (1, pack))
    padc = lambda b: jnp.pad(b, ((0, 0), (0, N - b.shape[1])))
    b_all = jnp.concatenate([padc(tile1(b0)), padc(tile1(b1)), padc(tile1(b2))], axis=0)

    dims = dict(K0=pack * in_in, H0=pack * h0, H1=pack * h1, NO=pack * out_out)
    return w_all, b_all, dims


def _mlp_kernel(x_ref, w_ref, b_ref, o_ref, *, K0, H0, H1, NO, sbp, n_sub):
    """Whole 3-layer MLP hot path, all tensors 128-lane dense.
    Matmuls on the MXU (bf16 in, f32 accum), bias/ReLU on the VPU, sigmoid on the EUP.
    The batch tile is processed in sub-blocks of `sbp` packed rows to bound vreg
    pressure and interleave MXU / VPU / EUP work across sub-blocks."""
    c1 = H0            # column offset of h_layer weights in the slab
    c2 = H0 + H1       # column offset of out_layer weights in the slab

    # Biases loaded once per tile (broadcast happens in the add, per sub-block).
    b0 = b_ref[0:1, 0:H0]
    b1 = b_ref[1:2, 0:H1]
    b2 = b_ref[2:3, 0:NO]

    @pl.loop(0, n_sub)
    def _(s):
        r = pl.multiple_of(s * sbp, sbp)

        # Cast to bf16 in-register (input arrives from HBM as f32 -- no wrapper convert).
        x = x_ref[pl.ds(r, sbp), :].astype(jnp.bfloat16)       # (sbp, K0)

        # in_layer + af (ReLU)
        y = jnp.dot(x, w_ref[0:K0, 0:c1],
                    preferred_element_type=jnp.float32) + b0
        y = jnp.maximum(y, 0.0)

        # h_layers[0] + af (ReLU)
        y = jnp.dot(y.astype(jnp.bfloat16), w_ref[0:H0, c1:c2],
                    preferred_element_type=jnp.float32) + b1
        y = jnp.maximum(y, 0.0)

        # out_layer (applied inside the loop in the reference forward)
        y = jnp.dot(y.astype(jnp.bfloat16), w_ref[0:H1, c2:c2 + NO],
                    preferred_element_type=jnp.float32) + b2

        # model_type == 'bin' -> sigmoid; store is exactly 128 lanes wide (unmasked vst)
        o_ref[pl.ds(r, sbp), :] = jax.nn.sigmoid(y)


def custom_model_forward(x, params, *, min_pallas_batch=2048, force_pallas=False):
    x = x.astype(jnp.float32)
    B, in_in = x.shape
    h0 = params[0].shape[1]
    h1 = params[2].shape[1]
    out_out = params[4].shape[1]

    # Small-batch fast path: pad/launch/resident-weight-DMA overheads dominate for
    # tiny B, so a fused XLA dense chain is strictly faster in the latency regime.
    if (B < min_pallas_batch) and not force_pallas:
        return reference_forward(x, params)

    assert 128 % out_out == 0, "lane-dense packing assumes out_out divides 128"
    pack = 128 // out_out                                      # 16 rows per packed row

    w_all, b_all, d = pack_params(params, pack)
    assert d["K0"] % 128 == 0 and d["H0"] % 128 == 0 and d["H1"] % 128 == 0

    # ---- Batch tiling ---------------------------------------------------------
    # g: row granularity so packed rows stay a multiple of 8 (f32 sublane tiles).
    g = pack * 8                       # 128 rows
    TB_TARGET = 8192                   # ~8K rows / grid step (amortizes 0.35us overhead)
    TB_MIN = 2048                      # don't shrink a step below this
    if B < 2 * TB_MIN:
        n_steps = 1
    else:
        n_steps = max(2, _cdiv(B, TB_TARGET))
        if n_steps % 2:                # even step count so v7x's two TCs stay balanced
            n_steps += 1
    tb = _round_up(_cdiv(B, n_steps), g)
    Bp = tb * n_steps
    if Bp != B:
        x = jnp.pad(x, ((0, Bp - B), (0, 0)))
    # Packing 16 consecutive rows into one 256-wide row is a contiguous (free) reshape.
    x_packed = x.reshape(Bp // pack, pack * in_in)             # f32, cast in-kernel

    tbp = tb // pack
    # In-kernel sub-block size: largest divisor of tbp up to 256 packed rows.
    sbp = tbp
    for cand in (256, 128, 64, 32, 16, 8):
        if tbp % cand == 0:
            sbp = cand
            break
    n_sub = tbp // sbp

    kernel = functools.partial(
        _mlp_kernel, K0=d["K0"], H0=d["H0"], H1=d["H1"], NO=d["NO"],
        sbp=sbp, n_sub=n_sub)

    # Advisory cost hint (logical FLOPs / HBM bytes / sigmoid count).
    cost = pl.CostEstimate(
        flops=2 * Bp * (in_in * h0 + h0 * h1 + h1 * out_out),
        transcendentals=Bp * out_out,
        bytes_accessed=Bp * 4 * (in_in + out_out) + w_all.size * 2 + b_all.size * 4,
    )

    out_packed = pl.pallas_call(
        kernel,
        out_shape=jax.ShapeDtypeStruct((Bp // pack, d["NO"]), jnp.float32),
        grid_spec=pltpu.PrefetchScalarGridSpec(
            num_scalar_prefetch=0,
            grid=(n_steps,),
            in_specs=[
                pl.BlockSpec((tbp, d["K0"]), lambda i: (i, 0)),   # packed f32 activations
                pl.BlockSpec(w_all.shape, lambda i: (0, 0)),      # resident bf16 weight slab
                pl.BlockSpec(b_all.shape, lambda i: (0, 0)),      # resident f32 bias slab
            ],
            out_specs=pl.BlockSpec((tbp, d["NO"]), lambda i: (i, 0)),
        ),
        compiler_params=pltpu.CompilerParams(
            dimension_semantics=("parallel",),   # batch axis shards across TCs on v7x
        ),
        cost_estimate=cost,
    )(x_packed, w_all, b_all)

    # (Bp//pack, pack*out_out) row-major == (Bp, out_out); drop the padded rows.
    return out_packed.reshape(Bp, out_out)[:B]


def reference_forward(x, params):
    """Pure-f32 JAX reference matching the PyTorch forward."""
    w0, b0, w1, b1, w2, b2 = params
    y = jnp.maximum(x @ w0 + b0, 0.0)          # in_layer + af
    y = jnp.maximum(y @ w1 + b1, 0.0)          # h_layers[0] + af
    y = y @ w2 + b2                            # out_layer
    return jax.nn.sigmoid(y)                   # model_type == 'bin'


def reference_forward_bf16(x, params):
    """Reference matching the kernel's bf16-in / f32-accumulate numerics."""
    w0, b0, w1, b1, w2, b2 = params
    bf = jnp.bfloat16
    y = jnp.dot(x.astype(bf), w0.astype(bf), preferred_element_type=jnp.float32) + b0
    y = jnp.maximum(y, 0.0)
    y = jnp.dot(y.astype(bf), w1.astype(bf), preferred_element_type=jnp.float32) + b1
    y = jnp.maximum(y, 0.0)
    y = jnp.dot(y.astype(bf), w2.astype(bf), preferred_element_type=jnp.float32) + b2
    return jax.nn.sigmoid(y)


if __name__ == "__main__":
    key = jax.random.PRNGKey(0)
    k_x, k_p, k_x2 = jax.random.split(key, 3)

    batch, in_in, hidden, out_out = 8, 16, [32, 32], 8
    params = init_params(k_p, in_in, hidden, out_out)

    # Small batch, forced through the Pallas kernel (single grid step, padded tile).
    x = jax.random.normal(k_x, (batch, in_in), jnp.float32)
    out = jax.block_until_ready(custom_model_forward(x, params, force_pallas=True))
    assert out.shape == (batch, out_out)
    ref_bf16 = reference_forward_bf16(x, params)   # same bf16 matmul inputs as the kernel
    ref_f32 = reference_forward(x, params)         # full-precision sanity check
    assert jnp.allclose(out, ref_bf16, atol=2e-3, rtol=2e-3)
    assert jnp.allclose(out, ref_f32, atol=5e-2, rtol=5e-2)

    # Larger batch exercising the multi-step grid (2 parallel steps).
    big_b = 4096
    x2 = jax.random.normal(k_x2, (big_b, in_in), jnp.float32)
    out2 = jax.block_until_ready(custom_model_forward(x2, params))
    assert out2.shape == (big_b, out_out)
    assert jnp.allclose(out2, reference_forward_bf16(x2, params), atol=2e-3, rtol=2e-3)

    print("KERNEL_OK")
</pallas_src>

<mosaic_0001>
module attributes {stable_mosaic.version = 11 : i64} {
  func.func @_mlp_kernel(%arg0: i32, %arg1: memref<8x256xf32, #tpu.memory_space<vmem>>, %arg2: memref<512x1152xbf16, #tpu.memory_space<vmem>>, %arg3: memref<3x512xf32, #tpu.memory_space<vmem>>, %arg4: memref<8x128xf32, #tpu.memory_space<vmem>>) attributes {dimension_semantics = [#tpu.dimension_semantics<parallel>], iteration_bounds = array<i64: 1>, scalar_prefetch = 0 : i64, scratch_operands = 0 : i64, tpu.core_type = #tpu.core_type<tc>, window_params = [{transform_indices = @transform_0, window_bounds = array<i64: 8, 256>}, {pipeline_mode = #tpu.pipeline_mode<synchronous>, transform_indices = @transform_1, window_bounds = array<i64: 512, 1152>}, {pipeline_mode = #tpu.pipeline_mode<synchronous>, transform_indices = @transform_2, window_bounds = array<i64: 3, 512>}, {transform_indices = @transform_3, window_bounds = array<i64: 8, 128>}]} {
    %c0 = arith.constant 0 : index
    %c0_0 = arith.constant 0 : index
    %0 = vector.load %arg3[%c0, %c0_0] : memref<3x512xf32, #tpu.memory_space<vmem>>, vector<1x512xf32>
    %c1 = arith.constant 1 : index
    %c0_1 = arith.constant 0 : index
    %1 = vector.load %arg3[%c1, %c0_1] : memref<3x512xf32, #tpu.memory_space<vmem>>, vector<1x512xf32>
    %c2 = arith.constant 2 : index
    %c0_2 = arith.constant 0 : index
    %2 = vector.load %arg3[%c2, %c0_2] : memref<3x512xf32, #tpu.memory_space<vmem>>, vector<1x128xf32>
    %c0_i32 = arith.constant 0 : i32
    %c1_i32 = arith.constant 1 : i32
    %3 = arith.muli %c0_i32, %c1_i32 : i32
    %c0_i32_3 = arith.constant 0 : i32
    %4 = arith.addi %c0_i32_3, %3 : i32
    %c8_i32 = arith.constant 8 : i32
    %5 = arith.muli %4, %c8_i32 : i32
    %6 = tpu.assume_multiple %5, 8 : i32
    %7 = arith.index_cast %6 : i32 to index
    %c0_4 = arith.constant 0 : index
    %8 = vector.load %arg1[%7, %c0_4] : memref<8x256xf32, #tpu.memory_space<vmem>>, vector<8x256xf32>
    %9 = arith.truncf %8 : vector<8x256xf32> to vector<8x256xbf16>
    %c0_5 = arith.constant 0 : index
    %c0_6 = arith.constant 0 : index
    %10 = vector.load %arg2[%c0_5, %c0_6] : memref<512x1152xbf16, #tpu.memory_space<vmem>>, vector<256x512xbf16>
    %cst = arith.constant dense<0.000000e+00> : vector<8x512xf32>
    %11 = tpu.matmul %9, %10, %cst {dimension_numbers = #tpu.dot_dimension_numbers<[1], [0], [0], [1], [0, 0, 1, 1], [], []>} : vector<8x256xbf16>, vector<256x512xbf16>, vector<8x512xf32> -> vector<8x512xf32>
    %12 = vector.broadcast %0 : vector<1x512xf32> to vector<8x512xf32>
    %13 = arith.addf %11, %12 : vector<8x512xf32>
    %cst_7 = arith.constant 0.000000e+00 : f32
    %14 = vector.broadcast %cst_7 : f32 to vector<8x512xf32>
    %15 = arith.maximumf %13, %14 : vector<8x512xf32>
    %16 = arith.truncf %15 : vector<8x512xf32> to vector<8x512xbf16>
    %c0_8 = arith.constant 0 : index
    %c512 = arith.constant 512 : index
    %17 = vector.load %arg2[%c0_8, %c512] : memref<512x1152xbf16, #tpu.memory_space<vmem>>, vector<512x512xbf16>
    %cst_9 = arith.constant dense<0.000000e+00> : vector<8x512xf32>
    %18 = tpu.matmul %16, %17, %cst_9 {dimension_numbers = #tpu.dot_dimension_numbers<[1], [0], [0], [1], [0, 0, 1, 1], [], []>} : vector<8x512xbf16>, vector<512x512xbf16>, vector<8x512xf32> -> vector<8x512xf32>
    %19 = vector.broadcast %1 : vector<1x512xf32> to vector<8x512xf32>
    %20 = arith.addf %18, %19 : vector<8x512xf32>
    %cst_10 = arith.constant 0.000000e+00 : f32
    %21 = vector.broadcast %cst_10 : f32 to vector<8x512xf32>
    %22 = arith.maximumf %20, %21 : vector<8x512xf32>
    %23 = arith.truncf %22 : vector<8x512xf32> to vector<8x512xbf16>
    %c0_11 = arith.constant 0 : index
    %c1024 = arith.constant 1024 : index
    %24 = vector.load %arg2[%c0_11, %c1024] : memref<512x1152xbf16, #tpu.memory_space<vmem>>, vector<512x128xbf16>
    %cst_12 = arith.constant dense<0.000000e+00> : vector<8x128xf32>
    %25 = tpu.matmul %23, %24, %cst_12 {dimension_numbers = #tpu.dot_dimension_numbers<[1], [0], [0], [1], [0, 0, 1, 1], [], []>} : vector<8x512xbf16>, vector<512x128xbf16>, vector<8x128xf32> -> vector<8x128xf32>
    %26 = vector.broadcast %2 : vector<1x128xf32> to vector<8x128xf32>
    %27 = arith.addf %25, %26 : vector<8x128xf32>
    %28 = arith.negf %27 : vector<8x128xf32>
    %29 = math.exp %28 : vector<8x128xf32>
    %cst_13 = arith.constant 1.000000e+00 : f32
    %30 = vector.broadcast %cst_13 : f32 to vector<8x128xf32>
    %31 = arith.addf %30, %29 : vector<8x128xf32>
    %32 = arith.divf %30, %31 : vector<8x128xf32>
    %33 = arith.index_cast %6 : i32 to index
    %c0_14 = arith.constant 0 : index
    %34 = vector.load %arg4[%33, %c0_14] : memref<8x128xf32, #tpu.memory_space<vmem>>, vector<8x128xf32>
    tpu.vector_store %arg4[%33, %c0_14], %32 {strides = array<i32>} : memref<8x128xf32, #tpu.memory_space<vmem>>, vector<8x128xf32>,
    %c1_i32_15 = arith.constant 1 : i32
    return
  }
  func.func @transform_0(%arg0: i32) -> (i32, i32) {
    %c0_i32 = arith.constant 0 : i32
    %c0_i32_0 = arith.constant 0 : i32
    return %arg0, %c0_i32 : i32, i32
  }
  func.func @transform_1(%arg0: i32) -> (i32, i32) {
    %c0_i32 = arith.constant 0 : i32
    %c0_i32_0 = arith.constant 0 : i32
    %c0_i32_1 = arith.constant 0 : i32
    return %c0_i32, %c0_i32_0 : i32, i32
  }
  func.func @transform_2(%arg0: i32) -> (i32, i32) {
    %c0_i32 = arith.constant 0 : i32
    %c0_i32_0 = arith.constant 0 : i32
    %c0_i32_1 = arith.constant 0 : i32
    return %c0_i32, %c0_i32_0 : i32, i32
  }
  func.func @transform_3(%arg0: i32) -> (i32, i32) {
    %c0_i32 = arith.constant 0 : i32
    %c0_i32_0 = arith.constant 0 : i32
    return %arg0, %c0_i32 : i32, i32
  }
}

</mosaic_0001>

<llo_original>
// kernel: tpu_custom_call.1
$region0: #{tpu_custom_call.1}
  #allocation0 [shape = 'u32[]', space=smem, size = 0x4, offset = 0x4, fixed_abs, tag = 'smem constant byte address 0x4 - core index']
  #allocation1 [shape = 'u32[144,128]{1,0:T(1,128)}', space=vmem, size = 0x12000, scoped, tag = 'internal scratch']
  %s0 = inlined_call_operand.hbm [shape: f32[8,256], index: 0, kind: input, shape index: {}]
  %s1 = inlined_call_operand.hbm [shape: bf16[512,1152], index: 1, kind: input, shape index: {}]
  %s2 = inlined_call_operand.hbm [shape: f32[3,512], index: 2, kind: input, shape index: {}]
  %s3 = inlined_call_operand.hbm [shape: f32[8,128], index: 3, kind: output, shape index: {}]
  %s4 = sld [smem:[#allocation0]]
  $region34: #{tpu_custom_call.1} parent=0
    _
  %s6 = ssub.s32 1, %s4
  %s7 = scalar_select 0, %s6, %s4
  $region1: #{tpu_custom_call.1} parent=0
    #allocation2 [shape = 'u8[8192]{0}', space=vmem, size = 0x2000, scoped, tag = 'input window, operand 0, single buffered']
    #allocation3 [shape = 's32[1]{0}', space=sflag, size = 0x4, scoped, tag = 'scoped memory for tpu_custom_call.1']
    #allocation4 [shape = 's32[1]{0}', space=sflag, size = 0x4, scoped, tag = 'scoped memory for tpu_custom_call.1']
    #allocation5 [shape = 'u8[1179648]{0}', space=vmem, size = 0x120000, scoped, tag = 'input window, operand 1, single buffered']
    #allocation6 [shape = 's32[1]{0}', space=sflag, size = 0x4, scoped, tag = 'scoped memory for tpu_custom_call.1']
    #allocation7 [shape = 'u8[8192]{0}', space=vmem, size = 0x2000, scoped, tag = 'input window, operand 2, single buffered']
    #allocation8 [shape = 'u8[4096]{0}', space=vmem, size = 0x1000, scoped, tag = 'output window, operand 0, single buffered']
    %8 = vsyncpa [#allocation3], 0
    %9 = vsyncpa [#allocation6], 0
    %10 = vsyncpa [#allocation4], 0
    // Predicated region
    $region2: #{tpu_custom_call.1} parent=1 // pred_check
      _
    $region3: #{tpu_custom_call.1} parent=1 // pred_check_branch
      %12 = sbr.rel (0) target = $region5
    $region4: #{tpu_custom_call.1} parent=1 // pred_region
      %s14 = ssub.s32 256, 256
      %15 = vsyncadd [#allocation3], %s14
      %s17 = sshll.u32 [#allocation2], 4
      %s18 = int_to_ptr.vmem [resolvable:$true] %s17
      %20 = dma.hbm_to_vmem [thread:$0]  %s0, 256, %s18, [#allocation3]
    $region5: #{tpu_custom_call.1} parent=1 // pred_fallthru
      _
    // Predicated region
    $region6: #{tpu_custom_call.1} parent=1 // pred_check
      _
    $region7: #{tpu_custom_call.1} parent=1 // pred_check_branch
      %22 = sbr.rel (0) target = $region9
    $region8: #{tpu_custom_call.1} parent=1 // pred_region
      %s24 = ssub.s32 36864, 36864
      %25 = vsyncadd [#allocation6], %s24
      %s26 = sshll.u32 [#allocation5], 4
      %s27 = int_to_ptr.vmem [resolvable:$true] %s26
      %32 = dma.hbm_to_vmem [thread:$0]  %s1, 36864, %s27, [#allocation6], 576, 576, 36
    $region9: #{tpu_custom_call.1} parent=1 // pred_fallthru
      _
    // Predicated region
    $region10: #{tpu_custom_call.1} parent=1 // pred_check
      _
    $region11: #{tpu_custom_call.1} parent=1 // pred_check_branch
      %34 = sbr.rel (0) target = $region13
    $region12: #{tpu_custom_call.1} parent=1 // pred_region
      %s36 = ssub.s32 256, 256
      %37 = vsyncadd [#allocation6], %s36
      %s39 = sshll.u32 [#allocation7], 4
      %s40 = int_to_ptr.vmem [resolvable:$true] %s39
      %42 = dma.hbm_to_vmem [thread:$0]  %s2, 256, %s40, [#allocation6]
    $region13: #{tpu_custom_call.1} parent=1 // pred_fallthru
      _
    // Predicated region
    $region14: #{tpu_custom_call.1} parent=1 // pred_check
      _
    $region15: #{tpu_custom_call.1} parent=1 // pred_check_branch
      %44 = sbr.rel (0) target = $region17
    $region16: #{tpu_custom_call.1} parent=1 // pred_region
      %45 = dma.done [#allocation3], 256
    $region17: #{tpu_custom_call.1} parent=1 // pred_fallthru
      _
    // Predicated region
    $region18: #{tpu_custom_call.1} parent=1 // pred_check
      _
    $region19: #{tpu_custom_call.1} parent=1 // pred_check_branch
      %47 = sbr.rel (0) target = $region21
    $region20: #{tpu_custom_call.1} parent=1 // pred_region
      %48 = dma.done [#allocation6], 36864
    $region21: #{tpu_custom_call.1} parent=1 // pred_fallthru
      _
    // Predicated region
    $region22: #{tpu_custom_call.1} parent=1 // pred_check
      _
    $region23: #{tpu_custom_call.1} parent=1 // pred_check_branch
      %50 = sbr.rel (0) target = $region25
    $region24: #{tpu_custom_call.1} parent=1 // pred_region
      %51 = dma.done [#allocation6], 256
    $region25: #{tpu_custom_call.1} parent=1 // pred_fallthru
      _
    %v53 = vld [vmem:[#allocation7] ss:$4 sm:$0xf]
    %s54 = scalar_lea.vmem [#allocation7], 1
    %v55 = vld [vmem:[%s54] ss:$4 sm:$0xf]
    %v56 = vld [vmem:[#allocation7 + $0x2] sm:$0x1]
    %s57 = smul.u32 0, 2
    %s58 = smul.addr %s57, 8
    %s59 = scalar_lea.vmem [#allocation2], %s58
    %v60 = vld [vmem:[%s59] sm:$0xff]
    %v61 = vld [vmem:[%s59 + $0x8] sm:$0xff]
    %v62 = vpack.c.bf16 %v60, %v60
    %v63 = vpack.c.bf16 %v61, %v61
    %v64 = vld [vmem:[#allocation5] sm:$0xff]
    %v65 = vld [vmem:[#allocation5 + $0x8] sm:$0xff]
    %v66 = vld [vmem:[#allocation5 + $0x24] sm:$0xff]
    %v67 = vld [vmem:[#allocation5 + $0x2c] sm:$0xff]
    %v68 = vld [vmem:[#allocation5 + $0x48] sm:$0xff]
    %v69 = vld [vmem:[#allocation5 + $0x50] sm:$0xff]
    %v70 = vld [vmem:[#allocation5 + $0x6c] sm:$0xff]
    %v71 = vld [vmem:[#allocation5 + $0x74] sm:$0xff]
    %v72 = vld [vmem:[#allocation5 + $0x90] sm:$0xff]
    %v73 = vld [vmem:[#allocation5 + $0x98] sm:$0xff]
    %v74 = vld [vmem:[#allocation5 + $0xb4] sm:$0xff]
    %v75 = vld [vmem:[#allocation5 + $0xbc] sm:$0xff]
    %v76 = vld [vmem:[#allocation5 + $0xd8] sm:$0xff]
    %v77 = vld [vmem:[#allocation5 + $0xe0] sm:$0xff]
    %v78 = vld [vmem:[#allocation5 + $0xfc] sm:$0xff]
    %v79 = vld [vmem:[#allocation5 + $0x104] sm:$0xff]
    %v80 = vld [vmem:[#allocation5 + $0x120] sm:$0xff]
    %v81 = vld [vmem:[#allocation5 + $0x128] sm:$0xff]
    %v82 = vld [vmem:[#allocation5 + $0x144] sm:$0xff]
    %v83 = vld [vmem:[#allocation5 + $0x14c] sm:$0xff]
    %v84 = vld [vmem:[#allocation5 + $0x168] sm:$0xff]
    %v85 = vld [vmem:[#allocation5 + $0x170] sm:$0xff]
    %v86 = vld [vmem:[#allocation5 + $0x18c] sm:$0xff]
    %v87 = vld [vmem:[#allocation5 + $0x194] sm:$0xff]
    %v88 = vld [vmem:[#allocation5 + $0x1b0] sm:$0xff]
    %v89 = vld [vmem:[#allocation5 + $0x1b8] sm:$0xff]
    %v90 = vld [vmem:[#allocation5 + $0x1d4] sm:$0xff]
    %v91 = vld [vmem:[#allocation5 + $0x1dc] sm:$0xff]
    %v92 = vld [vmem:[#allocation5 + $0x1f8] sm:$0xff]
    %v93 = vld [vmem:[#allocation5 + $0x200] sm:$0xff]
    %v94 = vld [vmem:[#allocation5 + $0x21c] sm:$0xff]
    %v95 = vld [vmem:[#allocation5 + $0x224] sm:$0xff]
    %v96 = vld [vmem:[#allocation5 + $0x240] sm:$0xff]
    %v97 = vld [vmem:[#allocation5 + $0x248] sm:$0xff]
    %v98 = vld [vmem:[#allocation5 + $0x264] sm:$0xff]
    %v99 = vld [vmem:[#allocation5 + $0x26c] sm:$0xff]
    %v100 = vld [vmem:[#allocation5 + $0x288] sm:$0xff]
    %v101 = vld [vmem:[#allocation5 + $0x290] sm:$0xff]
    %v102 = vld [vmem:[#allocation5 + $0x2ac] sm:$0xff]
    %v103 = vld [vmem:[#allocation5 + $0x2b4] sm:$0xff]
    %v104 = vld [vmem:[#allocation5 + $0x2d0] sm:$0xff]
    %v105 = vld [vmem:[#allocation5 + $0x2d8] sm:$0xff]
    %v106 = vld [vmem:[#allocation5 + $0x2f4] sm:$0xff]
    %v107 = vld [vmem:[#allocation5 + $0x2fc] sm:$0xff]
    %v108 = vld [vmem:[#allocation5 + $0x318] sm:$0xff]
    %v109 = vld [vmem:[#allocation5 + $0x320] sm:$0xff]
    %v110 = vld [vmem:[#allocation5 + $0x33c] sm:$0xff]
    %v111 = vld [vmem:[#allocation5 + $0x344] sm:$0xff]
    %v112 = vld [vmem:[#allocation5 + $0x360] sm:$0xff]
    %v113 = vld [vmem:[#allocation5 + $0x368] sm:$0xff]
    %v114 = vld [vmem:[#allocation5 + $0x384] sm:$0xff]
    %v115 = vld [vmem:[#allocation5 + $0x38c] sm:$0xff]
    %v116 = vld [vmem:[#allocation5 + $0x3a8] sm:$0xff]
    %v117 = vld [vmem:[#allocation5 + $0x3b0] sm:$0xff]
    %v118 = vld [vmem:[#allocation5 + $0x3cc] sm:$0xff]
    %v119 = vld [vmem:[#allocation5 + $0x3d4] sm:$0xff]
    %v120 = vld [vmem:[#allocation5 + $0x3f0] sm:$0xff]
    %v121 = vld [vmem:[#allocation5 + $0x3f8] sm:$0xff]
    %v122 = vld [vmem:[#allocation5 + $0x414] sm:$0xff]
    %v123 = vld [vmem:[#allocation5 + $0x41c] sm:$0xff]
    %v124 = vld [vmem:[#allocation5 + $0x438] sm:$0xff]
    %v125 = vld [vmem:[#allocation5 + $0x440] sm:$0xff]
    %v126 = vld [vmem:[#allocation5 + $0x45c] sm:$0xff]
    %v127 = vld [vmem:[#allocation5 + $0x464] sm:$0xff]
    %v129 = vlaneseq
    %v130 = vshrl.u32 %v129, 7
    %v131 = vsub.s32 0, %v130
    %v132 = vrot.slane %v53, %v131
    %v133 = vlaneseq
    %v134 = vshrl.u32 %v133, 7
    %v135 = vsub.s32 1, %v134
    %v136 = vrot.slane %v53, %v135
    %v137 = vlaneseq
    %v138 = vshrl.u32 %v137, 7
    %v139 = vsub.s32 2, %v138
    %v140 = vrot.slane %v53, %v139
    %v141 = vlaneseq
    %v142 = vshrl.u32 %v141, 7
    %v143 = vsub.s32 3, %v142
    %v144 = vrot.slane %v53, %v143
    %v213 = vunpack.c.l.b16 %v64
    %v214 = vunpack.c.h.b16 %v64
    %v215 = vunpack.c.l.b16 %v65
    %v216 = vunpack.c.h.b16 %v65
    %v217 = vunpack.c.l.b16 %v66
    %v218 = vunpack.c.h.b16 %v66
    %v219 = vunpack.c.l.b16 %v67
    %v220 = vunpack.c.h.b16 %v67
    %v221 = vunpack.c.l.b16 %v68
    %v222 = vunpack.c.h.b16 %v68
    %v223 = vunpack.c.l.b16 %v69
    %v224 = vunpack.c.h.b16 %v69
    %v225 = vunpack.c.l.b16 %v70
    %v226 = vunpack.c.h.b16 %v70
    %v227 = vunpack.c.l.b16 %v71
    %v228 = vunpack.c.h.b16 %v71
    %v229 = vunpack.c.l.b16 %v72
    %v230 = vunpack.c.h.b16 %v72
    %v231 = vunpack.c.l.b16 %v73
    %v232 = vunpack.c.h.b16 %v73
    %v233 = vunpack.c.l.b16 %v74
    %v234 = vunpack.c.h.b16 %v74
    %v235 = vunpack.c.l.b16 %v75
    %v236 = vunpack.c.h.b16 %v75
    %v237 = vunpack.c.l.b16 %v76
    %v238 = vunpack.c.h.b16 %v76
    %v239 = vunpack.c.l.b16 %v77
    %v240 = vunpack.c.h.b16 %v77
    %v241 = vunpack.c.l.b16 %v78
    %v242 = vunpack.c.h.b16 %v78
    %v243 = vunpack.c.l.b16 %v79
    %v244 = vunpack.c.h.b16 %v79
    %v245 = vunpack.c.l.b16 %v80
    %v246 = vunpack.c.h.b16 %v80
    %v247 = vunpack.c.l.b16 %v81
    %v248 = vunpack.c.h.b16 %v81
    %v249 = vunpack.c.l.b16 %v82
    %v250 = vunpack.c.h.b16 %v82
    %v251 = vunpack.c.l.b16 %v83
    %v252 = vunpack.c.h.b16 %v83
    %v253 = vunpack.c.l.b16 %v84
    %v254 = vunpack.c.h.b16 %v84
    %v255 = vunpack.c.l.b16 %v85
    %v256 = vunpack.c.h.b16 %v85
    %v257 = vunpack.c.l.b16 %v86
    %v258 = vunpack.c.h.b16 %v86
    %v259 = vunpack.c.l.b16 %v87
    %v260 = vunpack.c.h.b16 %v87
    %v261 = vunpack.c.l.b16 %v88
    %v262 = vunpack.c.h.b16 %v88
    %v263 = vunpack.c.l.b16 %v89
    %v264 = vunpack.c.h.b16 %v89
    %v265 = vunpack.c.l.b16 %v90
    %v266 = vunpack.c.h.b16 %v90
    %v267 = vunpack.c.l.b16 %v91
    %v268 = vunpack.c.h.b16 %v91
    %v269 = vunpack.c.l.b16 %v92
    %v270 = vunpack.c.h.b16 %v92
    %v271 = vunpack.c.l.b16 %v93
    %v272 = vunpack.c.h.b16 %v93
    %v273 = vunpack.c.l.b16 %v94
    %v274 = vunpack.c.h.b16 %v94
    %v275 = vunpack.c.l.b16 %v95
    %v276 = vunpack.c.h.b16 %v95
    %v277 = vunpack.c.l.b16 %v96
    %v278 = vunpack.c.h.b16 %v96
    %v279 = vunpack.c.l.b16 %v97
    %v280 = vunpack.c.h.b16 %v97
    %v281 = vunpack.c.l.b16 %v98
    %v282 = vunpack.c.h.b16 %v98
    %v283 = vunpack.c.l.b16 %v99
    %v284 = vunpack.c.h.b16 %v99
    %v285 = vunpack.c.l.b16 %v100
    %v286 = vunpack.c.h.b16 %v100
    %v287 = vunpack.c.l.b16 %v101
    %v288 = vunpack.c.h.b16 %v101
    %v289 = vunpack.c.l.b16 %v102
    %v290 = vunpack.c.h.b16 %v102
    %v291 = vunpack.c.l.b16 %v103
    %v292 = vunpack.c.h.b16 %v103
    %v293 = vunpack.c.l.b16 %v104
    %v294 = vunpack.c.h.b16 %v104
    %v295 = vunpack.c.l.b16 %v105
    %v296 = vunpack.c.h.b16 %v105
    %v297 = vunpack.c.l.b16 %v106
    %v298 = vunpack.c.h.b16 %v106
    %v299 = vunpack.c.l.b16 %v107
    %v300 = vunpack.c.h.b16 %v107
    %v301 = vunpack.c.l.b16 %v108
    %v302 = vunpack.c.h.b16 %v108
    %v303 = vunpack.c.l.b16 %v109
    %v304 = vunpack.c.h.b16 %v109
    %v305 = vunpack.c.l.b16 %v110
    %v306 = vunpack.c.h.b16 %v110
    %v307 = vunpack.c.l.b16 %v111
    %v308 = vunpack.c.h.b16 %v111
    %v309 = vunpack.c.l.b16 %v112
    %v310 = vunpack.c.h.b16 %v112
    %v311 = vunpack.c.l.b16 %v113
    %v312 = vunpack.c.h.b16 %v113
    %v313 = vunpack.c.l.b16 %v114
    %v314 = vunpack.c.h.b16 %v114
    %v315 = vunpack.c.l.b16 %v115
    %v316 = vunpack.c.h.b16 %v115
    %v317 = vunpack.c.l.b16 %v116
    %v318 = vunpack.c.h.b16 %v116
    %v319 = vunpack.c.l.b16 %v117
    %v320 = vunpack.c.h.b16 %v117
    %v321 = vunpack.c.l.b16 %v118
    %v322 = vunpack.c.h.b16 %v118
    %v323 = vunpack.c.l.b16 %v119
    %v324 = vunpack.c.h.b16 %v119
    %v325 = vunpack.c.l.b16 %v120
    %v326 = vunpack.c.h.b16 %v120
    %v327 = vunpack.c.l.b16 %v121
    %v328 = vunpack.c.h.b16 %v121
    %v329 = vunpack.c.l.b16 %v122
    %v330 = vunpack.c.h.b16 %v122
    %v331 = vunpack.c.l.b16 %v123
    %v332 = vunpack.c.h.b16 %v123
    %v333 = vunpack.c.l.b16 %v124
    %v334 = vunpack.c.h.b16 %v124
    %v335 = vunpack.c.l.b16 %v125
    %v336 = vunpack.c.h.b16 %v125
    %v337 = vunpack.c.l.b16 %v126
    %v338 = vunpack.c.h.b16 %v126
    %v339 = vunpack.c.l.b16 %v127
    %v340 = vunpack.c.h.b16 %v127
    %v341 = vpack.c.b16 %v217, %v213
    %v342 = vpack.c.b16 %v218, %v214
    %v343 = vpack.c.b16 %v219, %v215
    %v344 = vpack.c.b16 %v220, %v216
    %v345 = vpack.c.b16 %v225, %v221
    %v346 = vpack.c.b16 %v226, %v222
    %v347 = vpack.c.b16 %v227, %v223
    %v348 = vpack.c.b16 %v228, %v224
    %v349 = vpack.c.b16 %v233, %v229
    %v350 = vpack.c.b16 %v234, %v230
    %v351 = vpack.c.b16 %v235, %v231
    %v352 = vpack.c.b16 %v236, %v232
    %v353 = vpack.c.b16 %v241, %v237
    %v354 = vpack.c.b16 %v242, %v238
    %v355 = vpack.c.b16 %v243, %v239
    %v356 = vpack.c.b16 %v244, %v240
    %v357 = vpack.c.b16 %v249, %v245
    %v358 = vpack.c.b16 %v250, %v246
    %v359 = vpack.c.b16 %v251, %v247
    %v360 = vpack.c.b16 %v252, %v248
    %v361 = vpack.c.b16 %v257, %v253
    %v362 = vpack.c.b16 %v258, %v254
    %v363 = vpack.c.b16 %v259, %v255
    %v364 = vpack.c.b16 %v260, %v256
    %v365 = vpack.c.b16 %v265, %v261
    %v366 = vpack.c.b16 %v266, %v262
    %v367 = vpack.c.b16 %v267, %v263
    %v368 = vpack.c.b16 %v268, %v264
    %v369 = vpack.c.b16 %v273, %v269
    %v370 = vpack.c.b16 %v274, %v270
    %v371 = vpack.c.b16 %v275, %v271
    %v372 = vpack.c.b16 %v276, %v272
    %v373 = vpack.c.b16 %v281, %v277
    %v374 = vpack.c.b16 %v282, %v278
    %v375 = vpack.c.b16 %v283, %v279
    %v376 = vpack.c.b16 %v284, %v280
    %v377 = vpack.c.b16 %v289, %v285
    %v378 = vpack.c.b16 %v290, %v286
    %v379 = vpack.c.b16 %v291, %v287
    %v380 = vpack.c.b16 %v292, %v288
    %v381 = vpack.c.b16 %v297, %v293
    %v382 = vpack.c.b16 %v298, %v294
    %v383 = vpack.c.b16 %v299, %v295
    %v384 = vpack.c.b16 %v300, %v296
    %v385 = vpack.c.b16 %v305, %v301
    %v386 = vpack.c.b16 %v306, %v302
    %v387 = vpack.c.b16 %v307, %v303
    %v388 = vpack.c.b16 %v308, %v304
    %v389 = vpack.c.b16 %v313, %v309
    %v390 = vpack.c.b16 %v314, %v310
    %v391 = vpack.c.b16 %v315, %v311
    %v392 = vpack.c.b16 %v316, %v312
    %v393 = vpack.c.b16 %v321, %v317
    %v394 = vpack.c.b16 %v322, %v318
    %v395 = vpack.c.b16 %v323, %v319
    %v396 = vpack.c.b16 %v324, %v320
    %v397 = vpack.c.b16 %v329, %v325
    %v398 = vpack.c.b16 %v330, %v326
    %v399 = vpack.c.b16 %v331, %v327
    %v400 = vpack.c.b16 %v332, %v328
    %v401 = vpack.c.b16 %v337, %v333
    %v402 = vpack.c.b16 %v338, %v334
    %v403 = vpack.c.b16 %v339, %v335
    %v404 = vpack.c.b16 %v340, %v336
    %469 = vmatprep.subr.bf16.mxu0 %v370
    %470 = vmatpush1.bf16.msra.mxu0 %v369
    %471 = vmatprep.subr.bf16.mxu0 %v366
    %472 = vmatpush1.bf16.msra.mxu0 %v365
    %473 = vmatprep.subr.bf16.mxu0 %v362
    %474 = vmatpush1.bf16.msra.mxu0 %v361
    %475 = vmatprep.subr.bf16.mxu0 %v358
    %476 = vmatpush1.bf16.msra.mxu0 %v357
    %477 = vmatprep.subr.bf16.mxu0 %v354
    %478 = vmatpush1.bf16.msra.mxu0 %v353
    %479 = vmatprep.subr.bf16.mxu0 %v350
    %480 = vmatpush1.bf16.msra.mxu0 %v349
    %481 = vmatprep.subr.bf16.mxu0 %v346
    %482 = vmatpush1.bf16.msra.mxu0 %v345
    %483 = vmatprep.subr.bf16.mxu0 %v342
    %484 = vmatpush1.bf16.msra.mxu0 %v341
    %485 = vmatprep.subr.bf16.mxu0 %v402
    %486 = vmatpush2.bf16.msra.mxu0 %v401
    %487 = vmatprep.subr.bf16.mxu0 %v398
    %488 = vmatpush2.bf16.msra.mxu0 %v397
    %489 = vmatprep.subr.bf16.mxu0 %v394
    %490 = vmatpush2.bf16.msra.mxu0 %v393
    %491 = vmatprep.subr.bf16.mxu0 %v390
    %492 = vmatpush2.bf16.msra.mxu0 %v389
    %493 = vmatprep.subr.bf16.mxu0 %v386
    %494 = vmatpush2.bf16.msra.mxu0 %v385
    %495 = vmatprep.subr.bf16.mxu0 %v382
    %496 = vmatpush2.bf16.msra.mxu0 %v381
    %497 = vmatprep.subr.bf16.mxu0 %v378
    %498 = vmatpush2.bf16.msra.mxu0 %v377
    %499 = vmatprep.subr.bf16.mxu0 %v374
    %500 = vmatpush2.bf16.msra.mxu0 %v373
    %501 = vmatprep.mubr.bf16.mxu0 %v63
    %502 = vmatmul.mubr.bf16.gmra.mxu0 %v62
    %v503 = vpop.f32.mrf.mxu0
    %v504 = vadd.f32 %v132, %v503
    %v505 = vpop.f32.mrf.mxu0
    %v506 = vadd.f32 %v136, %v505
    %v507 = vpop.f32.mrf.mxu0
    %v508 = vpop.f32.mrf.mxu0
    %509 = vdwg.mxu0
    %510 = vmatprep.subr.bf16.mxu0 %v372
    %511 = vmatpush1.bf16.msra.mxu0 %v371
    %512 = vmatprep.subr.bf16.mxu0 %v368
    %513 = vmatpush1.bf16.msra.mxu0 %v367
    %514 = vmatprep.subr.bf16.mxu0 %v364
    %515 = vmatpush1.bf16.msra.mxu0 %v363
    %516 = vmatprep.subr.bf16.mxu0 %v360
    %517 = vmatpush1.bf16.msra.mxu0 %v359
    %518 = vmatprep.subr.bf16.mxu0 %v356
    %519 = vmatpush1.bf16.msra.mxu0 %v355
    %520 = vmatprep.subr.bf16.mxu0 %v352
    %521 = vmatpush1.bf16.msra.mxu0 %v351
    %522 = vmatprep.subr.bf16.mxu0 %v348
    %523 = vmatpush1.bf16.msra.mxu0 %v347
    %524 = vmatprep.subr.bf16.mxu0 %v344
    %525 = vmatpush1.bf16.msra.mxu0 %v343
    %526 = vmatprep.subr.bf16.mxu0 %v404
    %527 = vmatpush2.bf16.msra.mxu0 %v403
    %528 = vmatprep.subr.bf16.mxu0 %v400
    %529 = vmatpush2.bf16.msra.mxu0 %v399
    %530 = vmatprep.subr.bf16.mxu0 %v396
    %531 = vmatpush2.bf16.msra.mxu0 %v395
    %532 = vmatprep.subr.bf16.mxu0 %v392
    %533 = vmatpush2.bf16.msra.mxu0 %v391
    %534 = vmatprep.subr.bf16.mxu0 %v388
    %535 = vmatpush2.bf16.msra.mxu0 %v387
    %536 = vmatprep.subr.bf16.mxu0 %v384
    %537 = vmatpush2.bf16.msra.mxu0 %v383
    %538 = vmatprep.subr.bf16.mxu0 %v380
    %539 = vmatpush2.bf16.msra.mxu0 %v379
    %540 = vmatprep.subr.bf16.mxu0 %v376
    %541 = vmatpush2.bf16.msra.mxu0 %v375
    %542 = vmatprep.mubr.bf16.mxu0 %v63
    %543 = vmatmul.mubr.bf16.gmra.mxu0 %v62
    %v544 = vpop.f32.mrf.mxu0
    %v545 = vadd.f32 %v140, %v544
    %v546 = vpop.f32.mrf.mxu0
    %v547 = vadd.f32 %v144, %v546
    %v548 = vpop.f32.mrf.mxu0
    %v549 = vpop.f32.mrf.mxu0
    %550 = vdwg.mxu0
    %v551 = vmax.f32 %v504, 0.0
    %v552 = vmax.f32 %v506, 0.0
    %v553 = vmax.f32 %v545, 0.0
    %v554 = vmax.f32 %v547, 0.0
    %v555 = vpack.c.bf16 %v551, %v551
    %v556 = vpack.c.bf16 %v552, %v552
    %v557 = vpack.c.bf16 %v553, %v553
    %v558 = vpack.c.bf16 %v554, %v554
    %v559 = vld [vmem:[#allocation5 + $0x10] sm:$0xff]
    %v560 = vld [vmem:[#allocation5 + $0x18] sm:$0xff]
    %v561 = vld [vmem:[#allocation5 + $0x34] sm:$0xff]
    %v562 = vld [vmem:[#allocation5 + $0x3c] sm:$0xff]
    %v563 = vld [vmem:[#allocation5 + $0x58] sm:$0xff]
    %v564 = vld [vmem:[#allocation5 + $0x60] sm:$0xff]
    %v565 = vld [vmem:[#allocation5 + $0x7c] sm:$0xff]
    %v566 = vld [vmem:[#allocation5 + $0x84] sm:$0xff]
    %v567 = vld [vmem:[#allocation5 + $0xa0] sm:$0xff]
    %v568 = vld [vmem:[#allocation5 + $0xa8] sm:$0xff]
    %v569 = vld [vmem:[#allocation5 + $0xc4] sm:$0xff]
    %v570 = vld [vmem:[#allocation5 + $0xcc] sm:$0xff]
    %v571 = vld [vmem:[#allocation5 + $0xe8] sm:$0xff]
    %v572 = vld [vmem:[#allocation5 + $0xf0] sm:$0xff]
    %v573 = vld [vmem:[#allocation5 + $0x10c] sm:$0xff]
    %v574 = vld [vmem:[#allocation5 + $0x114] sm:$0xff]
    %v575 = vld [vmem:[#allocation5 + $0x130] sm:$0xff]
    %v576 = vld [vmem:[#allocation5 + $0x138] sm:$0xff]
    %v577 = vld [vmem:[#allocation5 + $0x154] sm:$0xff]
    %v578 = vld [vmem:[#allocation5 + $0x15c] sm:$0xff]
    %v579 = vld [vmem:[#allocation5 + $0x178] sm:$0xff]
    %v580 = vld [vmem:[#allocation5 + $0x180] sm:$0xff]
    %v581 = vld [vmem:[#allocation5 + $0x19c] sm:$0xff]
    %v582 = vld [vmem:[#allocation5 + $0x1a4] sm:$0xff]
    %v583 = vld [vmem:[#allocation5 + $0x1c0] sm:$0xff]
    %v584 = vld [vmem:[#allocation5 + $0x1c8] sm:$0xff]
    %v585 = vld [vmem:[#allocation5 + $0x1e4] sm:$0xff]
    %v586 = vld [vmem:[#allocation5 + $0x1ec] sm:$0xff]
    %v587 = vld [vmem:[#allocation5 + $0x208] sm:$0xff]
    %v588 = vld [vmem:[#allocation5 + $0x210] sm:$0xff]
    %v589 = vld [vmem:[#allocation5 + $0x22c] sm:$0xff]
    %v590 = vld [vmem:[#allocation5 + $0x234] sm:$0xff]
    %v591 = vld [vmem:[#allocation5 + $0x250] sm:$0xff]
    %v592 = vld [vmem:[#allocation5 + $0x258] sm:$0xff]
    %v593 = vld [vmem:[#allocation5 + $0x274] sm:$0xff]
    %v594 = vld [vmem:[#allocation5 + $0x27c] sm:$0xff]
    %v595 = vld [vmem:[#allocation5 + $0x298] sm:$0xff]
    %v596 = vld [vmem:[#allocation5 + $0x2a0] sm:$0xff]
    %v597 = vld [vmem:[#allocation5 + $0x2bc] sm:$0xff]
    %v598 = vld [vmem:[#allocation5 + $0x2c4] sm:$0xff]
    %v599 = vld [vmem:[#allocation5 + $0x2e0] sm:$0xff]
    %v600 = vld [vmem:[#allocation5 + $0x2e8] sm:$0xff]
    %v601 = vld [vmem:[#allocation5 + $0x304] sm:$0xff]
    %v602 = vld [vmem:[#allocation5 + $0x30c] sm:$0xff]
    %v603 = vld [vmem:[#allocation5 + $0x328] sm:$0xff]
    %v604 = vld [vmem:[#allocation5 + $0x330] sm:$0xff]
    %v605 = vld [vmem:[#allocation5 + $0x34c] sm:$0xff]
    %v606 = vld [vmem:[#allocation5 + $0x354] sm:$0xff]
    %v607 = vld [vmem:[#allocation5 + $0x370] sm:$0xff]
    %v608 = vld [vmem:[#allocation5 + $0x378] sm:$0xff]
    %v609 = vld [vmem:[#allocation5 + $0x394] sm:$0xff]
    %v610 = vld [vmem:[#allocation5 + $0x39c] sm:$0xff]
    %v611 = vld [vmem:[#allocation5 + $0x3b8] sm:$0xff]
    %v612 = vld [vmem:[#allocation5 + $0x3c0] sm:$0xff]
    %v613 = vld [vmem:[#allocation5 + $0x3dc] sm:$0xff]
    %v614 = vld [vmem:[#allocation5 + $0x3e4] sm:$0xff]
    %v615 = vld [vmem:[#allocation5 + $0x400] sm:$0xff]
    %v616 = vld [vmem:[#allocation5 + $0x408] sm:$0xff]
    %v617 = vld [vmem:[#allocation5 + $0x424] sm:$0xff]
    %v618 = vld [vmem:[#allocation5 + $0x42c] sm:$0xff]
    %v619 = vld [vmem:[#allocation5 + $0x448] sm:$0xff]
    %v620 = vld [vmem:[#allocation5 + $0x450] sm:$0xff]
    %v621 = vld [vmem:[#allocation5 + $0x46c] sm:$0xff]
    %v622 = vld [vmem:[#allocation5 + $0x474] sm:$0xff]
    %v623 = vld [vmem:[#allocation5 + $0x490] sm:$0xff]
    %v624 = vld [vmem:[#allocation5 + $0x498] sm:$0xff]
    %v625 = vld [vmem:[#allocation5 + $0x4b4] sm:$0xff]
    %v626 = vld [vmem:[#allocation5 + $0x4bc] sm:$0xff]
    %v627 = vld [vmem:[#allocation5 + $0x4d8] sm:$0xff]
    %v628 = vld [vmem:[#allocation5 + $0x4e0] sm:$0xff]
    %v629 = vld [vmem:[#allocation5 + $0x4fc] sm:$0xff]
    %v630 = vld [vmem:[#allocation5 + $0x504] sm:$0xff]
    %v631 = vld [vmem:[#allocation5 + $0x520] sm:$0xff]
    %v632 = vld [vmem:[#allocation5 + $0x528] sm:$0xff]
    %v633 = vld [vmem:[#allocation5 + $0x544] sm:$0xff]
    %v634 = vld [vmem:[#allocation5 + $0x54c] sm:$0xff]
    %v635 = vld [vmem:[#allocation5 + $0x568] sm:$0xff]
    %v636 = vld [vmem:[#allocation5 + $0x570] sm:$0xff]
    %v637 = vld [vmem:[#allocation5 + $0x58c] sm:$0xff]
    %v638 = vld [vmem:[#allocation5 + $0x594] sm:$0xff]
    %v639 = vld [vmem:[#allocation5 + $0x5b0] sm:$0xff]
    %v640 = vld [vmem:[#allocation5 + $0x5b8] sm:$0xff]
    %v641 = vld [vmem:[#allocation5 + $0x5d4] sm:$0xff]
    %v642 = vld [vmem:[#allocation5 + $0x5dc] sm:$0xff]
    %v643 = vld [vmem:[#allocation5 + $0x5f8] sm:$0xff]
    %v644 = vld [vmem:[#allocation5 + $0x600] sm:$0xff]
    %v645 = vld [vmem:[#allocation5 + $0x61c] sm:$0xff]
    %v646 = vld [vmem:[#allocation5 + $0x624] sm:$0xff]
    %v647 = vld [vmem:[#allocation5 + $0x640] sm:$0xff]
    %v648 = vld [vmem:[#allocation5 + $0x648] sm:$0xff]
    %v649 = vld [vmem:[#allocation5 + $0x664] sm:$0xff]
    %v650 = vld [vmem:[#allocation5 + $0x66c] sm:$0xff]
    %v651 = vld [vmem:[#allocation5 + $0x688] sm:$0xff]
    %v652 = vld [vmem:[#allocation5 + $0x690] sm:$0xff]
    %v653 = vld [vmem:[#allocation5 + $0x6ac] sm:$0xff]
    %v654 = vld [vmem:[#allocation5 + $0x6b4] sm:$0xff]
    %v655 = vld [vmem:[#allocation5 + $0x6d0] sm:$0xff]
    %v656 = vld [vmem:[#allocation5 + $0x6d8] sm:$0xff]
    %v657 = vld [vmem:[#allocation5 + $0x6f4] sm:$0xff]
    %v658 = vld [vmem:[#allocation5 + $0x6fc] sm:$0xff]
    %v659 = vld [vmem:[#allocation5 + $0x718] sm:$0xff]
    %v660 = vld [vmem:[#allocation5 + $0x720] sm:$0xff]
    %v661 = vld [vmem:[#allocation5 + $0x73c] sm:$0xff]
    %v662 = vld [vmem:[#allocation5 + $0x744] sm:$0xff]
    %v663 = vld [vmem:[#allocation5 + $0x760] sm:$0xff]
    %v664 = vld [vmem:[#allocation5 + $0x768] sm:$0xff]
    %v665 = vld [vmem:[#allocation5 + $0x784] sm:$0xff]
    %v666 = vld [vmem:[#allocation5 + $0x78c] sm:$0xff]
    %v667 = vld [vmem:[#allocation5 + $0x7a8] sm:$0xff]
    %v668 = vld [vmem:[#allocation5 + $0x7b0] sm:$0xff]
    %v669 = vld [vmem:[#allocation5 + $0x7cc] sm:$0xff]
    %v670 = vld [vmem:[#allocation5 + $0x7d4] sm:$0xff]
    %v671 = vld [vmem:[#allocation5 + $0x7f0] sm:$0xff]
    %v672 = vld [vmem:[#allocation5 + $0x7f8] sm:$0xff]
    %v673 = vld [vmem:[#allocation5 + $0x814] sm:$0xff]
    %v674 = vld [vmem:[#allocation5 + $0x81c] sm:$0xff]
    %v675 = vld [vmem:[#allocation5 + $0x838] sm:$0xff]
    %v676 = vld [vmem:[#allocation5 + $0x840] sm:$0xff]
    %v677 = vld [vmem:[#allocation5 + $0x85c] sm:$0xff]
    %v678 = vld [vmem:[#allocation5 + $0x864] sm:$0xff]
    %v679 = vld [vmem:[#allocation5 + $0x880] sm:$0xff]
    %v680 = vld [vmem:[#allocation5 + $0x888] sm:$0xff]
    %v681 = vld [vmem:[#allocation5 + $0x8a4] sm:$0xff]
    %v682 = vld [vmem:[#allocation5 + $0x8ac] sm:$0xff]
    %v683 = vld [vmem:[#allocation5 + $0x8c8] sm:$0xff]
    %v684 = vld [vmem:[#allocation5 + $0x8d0] sm:$0xff]
    %v685 = vld [vmem:[#allocation5 + $0x8ec] sm:$0xff]
    %v686 = vld [vmem:[#allocation5 + $0x8f4] sm:$0xff]
    %v688 = vlaneseq
    %v689 = vshrl.u32 %v688, 7
    %v690 = vsub.s32 0, %v689
    %v691 = vrot.slane %v55, %v690
    %v692 = vlaneseq
    %v693 = vshrl.u32 %v692, 7
    %v694 = vsub.s32 1, %v693
    %v695 = vrot.slane %v55, %v694
    %v696 = vlaneseq
    %v697 = vshrl.u32 %v696, 7
    %v698 = vsub.s32 2, %v697
    %v699 = vrot.slane %v55, %v698
    %v700 = vlaneseq
    %v701 = vshrl.u32 %v700, 7
    %v702 = vsub.s32 3, %v701
    %v703 = vrot.slane %v55, %v702
    %v836 = vunpack.c.l.b16 %v559
    %v837 = vunpack.c.h.b16 %v559
    %v838 = vunpack.c.l.b16 %v560
    %v839 = vunpack.c.h.b16 %v560
    %v840 = vunpack.c.l.b16 %v561
    %v841 = vunpack.c.h.b16 %v561
    %v842 = vunpack.c.l.b16 %v562
    %v843 = vunpack.c.h.b16 %v562
    %v844 = vunpack.c.l.b16 %v563
    %v845 = vunpack.c.h.b16 %v563
    %v846 = vunpack.c.l.b16 %v564
    %v847 = vunpack.c.h.b16 %v564
    %v848 = vunpack.c.l.b16 %v565
    %v849 = vunpack.c.h.b16 %v565
    %v850 = vunpack.c.l.b16 %v566
    %v851 = vunpack.c.h.b16 %v566
    %v852 = vunpack.c.l.b16 %v567
    %v853 = vunpack.c.h.b16 %v567
    %v854 = vunpack.c.l.b16 %v568
    %v855 = vunpack.c.h.b16 %v568
    %v856 = vunpack.c.l.b16 %v569
    %v857 = vunpack.c.h.b16 %v569
    %v858 = vunpack.c.l.b16 %v570
    %v859 = vunpack.c.h.b16 %v570
    %v860 = vunpack.c.l.b16 %v571
    %v861 = vunpack.c.h.b16 %v571
    %v862 = vunpack.c.l.b16 %v572
    %v863 = vunpack.c.h.b16 %v572
    %v864 = vunpack.c.l.b16 %v573
    %v865 = vunpack.c.h.b16 %v573
    %v866 = vunpack.c.l.b16 %v574
    %v867 = vunpack.c.h.b16 %v574
    %v868 = vunpack.c.l.b16 %v575
    %v869 = vunpack.c.h.b16 %v575
    %v870 = vunpack.c.l.b16 %v576
    %v871 = vunpack.c.h.b16 %v576
    %v872 = vunpack.c.l.b16 %v577
    %v873 = vunpack.c.h.b16 %v577
    %v874 = vunpack.c.l.b16 %v578
    %v875 = vunpack.c.h.b16 %v578
    %v876 = vunpack.c.l.b16 %v579
    %v877 = vunpack.c.h.b16 %v579
    %v878 = vunpack.c.l.b16 %v580
    %v879 = vunpack.c.h.b16 %v580
    %v880 = vunpack.c.l.b16 %v581
    %v881 = vunpack.c.h.b16 %v581
    %v882 = vunpack.c.l.b16 %v582
    %v883 = vunpack.c.h.b16 %v582
    %v884 = vunpack.c.l.b16 %v583
    %v885 = vunpack.c.h.b16 %v583
    %v886 = vunpack.c.l.b16 %v584
    %v887 = vunpack.c.h.b16 %v584
    %v888 = vunpack.c.l.b16 %v585
    %v889 = vunpack.c.h.b16 %v585
    %v890 = vunpack.c.l.b16 %v586
    %v891 = vunpack.c.h.b16 %v586
    %v892 = vunpack.c.l.b16 %v587
    %v893 = vunpack.c.h.b16 %v587
    %v894 = vunpack.c.l.b16 %v588
    %v895 = vunpack.c.h.b16 %v588
    %v896 = vunpack.c.l.b16 %v589
    %v897 = vunpack.c.h.b16 %v589
    %v898 = vunpack.c.l.b16 %v590
    %v899 = vunpack.c.h.b16 %v590
    %v900 = vunpack.c.l.b16 %v591
    %v901 = vunpack.c.h.b16 %v591
    %v902 = vunpack.c.l.b16 %v592
    %v903 = vunpack.c.h.b16 %v592
    %v904 = vunpack.c.l.b16 %v593
    %v905 = vunpack.c.h.b16 %v593
    %v906 = vunpack.c.l.b16 %v594
    %v907 = vunpack.c.h.b16 %v594
    %v908 = vunpack.c.l.b16 %v595
    %v909 = vunpack.c.h.b16 %v595
    %v910 = vunpack.c.l.b16 %v596
    %v911 = vunpack.c.h.b16 %v596
    %v912 = vunpack.c.l.b16 %v597
    %v913 = vunpack.c.h.b16 %v597
    %v914 = vunpack.c.l.b16 %v598
    %v915 = vunpack.c.h.b16 %v598
    %v916 = vunpack.c.l.b16 %v599
    %v917 = vunpack.c.h.b16 %v599
    %v918 = vunpack.c.l.b16 %v600
    %v919 = vunpack.c.h.b16 %v600
    %v920 = vunpack.c.l.b16 %v601
    %v921 = vunpack.c.h.b16 %v601
    %v922 = vunpack.c.l.b16 %v602
    %v923 = vunpack.c.h.b16 %v602
    %v924 = vunpack.c.l.b16 %v603
    %v925 = vunpack.c.h.b16 %v603
    %v926 = vunpack.c.l.b16 %v604
    %v927 = vunpack.c.h.b16 %v604
    %v928 = vunpack.c.l.b16 %v605
    %v929 = vunpack.c.h.b16 %v605
    %v930 = vunpack.c.l.b16 %v606
    %v931 = vunpack.c.h.b16 %v606
    %v932 = vunpack.c.l.b16 %v607
    %v933 = vunpack.c.h.b16 %v607
    %v934 = vunpack.c.l.b16 %v608
    %v935 = vunpack.c.h.b16 %v608
    %v936 = vunpack.c.l.b16 %v609
    %v937 = vunpack.c.h.b16 %v609
    %v938 = vunpack.c.l.b16 %v610
    %v939 = vunpack.c.h.b16 %v610
    %v940 = vunpack.c.l.b16 %v611
    %v941 = vunpack.c.h.b16 %v611
    %v942 = vunpack.c.l.b16 %v612
    %v943 = vunpack.c.h.b16 %v612
    %v944 = vunpack.c.l.b16 %v613
    %v945 = vunpack.c.h.b16 %v613
    %v946 = vunpack.c.l.b16 %v614
    %v947 = vunpack.c.h.b16 %v614
    %v948 = vunpack.c.l.b16 %v615
    %v949 = vunpack.c.h.b16 %v615
    %v950 = vunpack.c.l.b16 %v616
    %v951 = vunpack.c.h.b16 %v616
    %v952 = vunpack.c.l.b16 %v617
    %v953 = vunpack.c.h.b16 %v617
    %v954 = vunpack.c.l.b16 %v618
    %v955 = vunpack.c.h.b16 %v618
    %v956 = vunpack.c.l.b16 %v619
    %v957 = vunpack.c.h.b16 %v619
    %v958 = vunpack.c.l.b16 %v620
    %v959 = vunpack.c.h.b16 %v620
    %v960 = vunpack.c.l.b16 %v621
    %v961 = vunpack.c.h.b16 %v621
    %v962 = vunpack.c.l.b16 %v622
    %v963 = vunpack.c.h.b16 %v622
    %v964 = vunpack.c.l.b16 %v623
    %v965 = vunpack.c.h.b16 %v623
    %v966 = vunpack.c.l.b16 %v624
    %v967 = vunpack.c.h.b16 %v624
    %v968 = vunpack.c.l.b16 %v625
    %v969 = vunpack.c.h.b16 %v625
    %v970 = vunpack.c.l.b16 %v626
    %v971 = vunpack.c.h.b16 %v626
    %v972 = vunpack.c.l.b16 %v627
    %v973 = vunpack.c.h.b16 %v627
    %v974 = vunpack.c.l.b16 %v628
    %v975 = vunpack.c.h.b16 %v628
    %v976 = vunpack.c.l.b16 %v629
    %v977 = vunpack.c.h.b16 %v629
    %v978 = vunpack.c.l.b16 %v630
    %v979 = vunpack.c.h.b16 %v630
    %v980 = vunpack.c.l.b16 %v631
    %v981 = vunpack.c.h.b16 %v631
    %v982 = vunpack.c.l.b16 %v632
    %v983 = vunpack.c.h.b16 %v632
    %v984 = vunpack.c.l.b16 %v633
    %v985 = vunpack.c.h.b16 %v633
    %v986 = vunpack.c.l.b16 %v634
    %v987 = vunpack.c.h.b16 %v634
    %v988 = vunpack.c.l.b16 %v635
    %v989 = vunpack.c.h.b16 %v635
    %v990 = vunpack.c.l.b16 %v636
    %v991 = vunpack.c.h.b16 %v636
    %v992 = vunpack.c.l.b16 %v637
    %v993 = vunpack.c.h.b16 %v637
    %v994 = vunpack.c.l.b16 %v638
    %v995 = vunpack.c.h.b16 %v638
    %v996 = vunpack.c.l.b16 %v639
    %v997 = vunpack.c.h.b16 %v639
    %v998 = vunpack.c.l.b16 %v640
    %v999 = vunpack.c.h.b16 %v640
    %v1000 = vunpack.c.l.b16 %v641
    %v1001 = vunpack.c.h.b16 %v641
    %v1002 = vunpack.c.l.b16 %v642
    %v1003 = vunpack.c.h.b16 %v642
    %v1004 = vunpack.c.l.b16 %v643
    %v1005 = vunpack.c.h.b16 %v643
    %v1006 = vunpack.c.l.b16 %v644
    %v1007 = vunpack.c.h.b16 %v644
    %v1008 = vunpack.c.l.b16 %v645
    %v1009 = vunpack.c.h.b16 %v645
    %v1010 = vunpack.c.l.b16 %v646
    %v1011 = vunpack.c.h.b16 %v646
    %v1012 = vunpack.c.l.b16 %v647
    %v1013 = vunpack.c.h.b16 %v647
    %v1014 = vunpack.c.l.b16 %v648
    %v1015 = vunpack.c.h.b16 %v648
    %v1016 = vunpack.c.l.b16 %v649
    %v1017 = vunpack.c.h.b16 %v649
    %v1018 = vunpack.c.l.b16 %v650
    %v1019 = vunpack.c.h.b16 %v650
    %v1020 = vunpack.c.l.b16 %v651
    %v1021 = vunpack.c.h.b16 %v651
    %v1022 = vunpack.c.l.b16 %v652
    %v1023 = vunpack.c.h.b16 %v652
    %v1024 = vunpack.c.l.b16 %v653
    %v1025 = vunpack.c.h.b16 %v653
    %v1026 = vunpack.c.l.b16 %v654
    %v1027 = vunpack.c.h.b16 %v654
    %v1028 = vunpack.c.l.b16 %v655
    %v1029 = vunpack.c.h.b16 %v655
    %v1030 = vunpack.c.l.b16 %v656
    %v1031 = vunpack.c.h.b16 %v656
    %v1032 = vunpack.c.l.b16 %v657
    %v1033 = vunpack.c.h.b16 %v657
    %v1034 = vunpack.c.l.b16 %v658
    %v1035 = vunpack.c.h.b16 %v658
    %v1036 = vunpack.c.l.b16 %v659
    %v1037 = vunpack.c.h.b16 %v659
    %v1038 = vunpack.c.l.b16 %v660
    %v1039 = vunpack.c.h.b16 %v660
    %v1040 = vunpack.c.l.b16 %v661
    %v1041 = vunpack.c.h.b16 %v661
    %v1042 = vunpack.c.l.b16 %v662
    %v1043 = vunpack.c.h.b16 %v662
    %v1044 = vunpack.c.l.b16 %v663
    %v1045 = vunpack.c.h.b16 %v663
    %v1046 = vunpack.c.l.b16 %v664
    %v1047 = vunpack.c.h.b16 %v664
    %v1048 = vunpack.c.l.b16 %v665
    %v1049 = vunpack.c.h.b16 %v665
    %v1050 = vunpack.c.l.b16 %v666
    %v1051 = vunpack.c.h.b16 %v666
    %v1052 = vunpack.c.l.b16 %v667
    %v1053 = vunpack.c.h.b16 %v667
    %v1054 = vunpack.c.l.b16 %v668
    %v1055 = vunpack.c.h.b16 %v668
    %v1056 = vunpack.c.l.b16 %v669
    %v1057 = vunpack.c.h.b16 %v669
    %v1058 = vunpack.c.l.b16 %v670
    %v1059 = vunpack.c.h.b16 %v670
    %v1060 = vunpack.c.l.b16 %v671
    %v1061 = vunpack.c.h.b16 %v671
    %v1062 = vunpack.c.l.b16 %v672
    %v1063 = vunpack.c.h.b16 %v672
    %v1064 = vunpack.c.l.b16 %v673
    %v1065 = vunpack.c.h.b16 %v673
    %v1066 = vunpack.c.l.b16 %v674
    %v1067 = vunpack.c.h.b16 %v674
    %v1068 = vunpack.c.l.b16 %v675
    %v1069 = vunpack.c.h.b16 %v675
    %v1070 = vunpack.c.l.b16 %v676
    %v1071 = vunpack.c.h.b16 %v676
    %v1072 = vunpack.c.l.b16 %v677
    %v1073 = vunpack.c.h.b16 %v677
    %v1074 = vunpack.c.l.b16 %v678
    %v1075 = vunpack.c.h.b16 %v678
    %v1076 = vunpack.c.l.b16 %v679
    %v1077 = vunpack.c.h.b16 %v679
    %v1078 = vunpack.c.l.b16 %v680
    %v1079 = vunpack.c.h.b16 %v680
    %v1080 = vunpack.c.l.b16 %v681
    %v1081 = vunpack.c.h.b16 %v681
    %v1082 = vunpack.c.l.b16 %v682
    %v1083 = vunpack.c.h.b16 %v682
    %v1084 = vunpack.c.l.b16 %v683
    %v1085 = vunpack.c.h.b16 %v683
    %v1086 = vunpack.c.l.b16 %v684
    %v1087 = vunpack.c.h.b16 %v684
    %v1088 = vunpack.c.l.b16 %v685
    %v1089 = vunpack.c.h.b16 %v685
    %v1090 = vunpack.c.l.b16 %v686
    %v1091 = vunpack.c.h.b16 %v686
    %v1092 = vpack.c.b16 %v840, %v836
    %v1093 = vpack.c.b16 %v841, %v837
    %v1094 = vpack.c.b16 %v842, %v838
    %v1095 = vpack.c.b16 %v843, %v839
    %v1096 = vpack.c.b16 %v848, %v844
    %v1097 = vpack.c.b16 %v849, %v845
    %v1098 = vpack.c.b16 %v850, %v846
    %v1099 = vpack.c.b16 %v851, %v847
    %v1100 = vpack.c.b16 %v856, %v852
    %v1101 = vpack.c.b16 %v857, %v853
    %v1102 = vpack.c.b16 %v858, %v854
    %v1103 = vpack.c.b16 %v859, %v855
    %v1104 = vpack.c.b16 %v864, %v860
    %v1105 = vpack.c.b16 %v865, %v861
    %v1106 = vpack.c.b16 %v866, %v862
    %v1107 = vpack.c.b16 %v867, %v863
    %v1108 = vpack.c.b16 %v872, %v868
    %v1109 = vpack.c.b16 %v873, %v869
    %v1110 = vpack.c.b16 %v874, %v870
    %v1111 = vpack.c.b16 %v875, %v871
    %v1112 = vpack.c.b16 %v880, %v876
    %v1113 = vpack.c.b16 %v881, %v877
    %v1114 = vpack.c.b16 %v882, %v878
    %v1115 = vpack.c.b16 %v883, %v879
    %v1116 = vpack.c.b16 %v888, %v884
    %v1117 = vpack.c.b16 %v889, %v885
    %v1118 = vpack.c.b16 %v890, %v886
    %v1119 = vpack.c.b16 %v891, %v887
    %v1120 = vpack.c.b16 %v896, %v892
    %v1121 = vpack.c.b16 %v897, %v893
    %v1122 = vpack.c.b16 %v898, %v894
    %v1123 = vpack.c.b16 %v899, %v895
    %v1124 = vpack.c.b16 %v904, %v900
    %v1125 = vpack.c.b16 %v905, %v901
    %v1126 = vpack.c.b16 %v906, %v902
    %v1127 = vpack.c.b16 %v907, %v903
    %v1128 = vpack.c.b16 %v912, %v908
    %v1129 = vpack.c.b16 %v913, %v909
    %v1130 = vpack.c.b16 %v914, %v910
    %v1131 = vpack.c.b16 %v915, %v911
    %v1132 = vpack.c.b16 %v920, %v916
    %v1133 = vpack.c.b16 %v921, %v917
    %v1134 = vpack.c.b16 %v922, %v918
    %v1135 = vpack.c.b16 %v923, %v919
    %v1136 = vpack.c.b16 %v928, %v924
    %v1137 = vpack.c.b16 %v929, %v925
    %v1138 = vpack.c.b16 %v930, %v926
    %v1139 = vpack.c.b16 %v931, %v927
    %v1140 = vpack.c.b16 %v936, %v932
    %v1141 = vpack.c.b16 %v937, %v933
    %v1142 = vpack.c.b16 %v938, %v934
    %v1143 = vpack.c.b16 %v939, %v935
    %v1144 = vpack.c.b16 %v944, %v940
    %v1145 = vpack.c.b16 %v945, %v941
    %v1146 = vpack.c.b16 %v946, %v942
    %v1147 = vpack.c.b16 %v947, %v943
    %v1148 = vpack.c.b16 %v952, %v948
    %v1149 = vpack.c.b16 %v953, %v949
    %v1150 = vpack.c.b16 %v954, %v950
    %v1151 = vpack.c.b16 %v955, %v951
    %v1152 = vpack.c.b16 %v960, %v956
    %v1153 = vpack.c.b16 %v961, %v957
    %v1154 = vpack.c.b16 %v962, %v958
    %v1155 = vpack.c.b16 %v963, %v959
    %v1156 = vpack.c.b16 %v968, %v964
    %v1157 = vpack.c.b16 %v969, %v965
    %v1158 = vpack.c.b16 %v970, %v966
    %v1159 = vpack.c.b16 %v971, %v967
    %v1160 = vpack.c.b16 %v976, %v972
    %v1161 = vpack.c.b16 %v977, %v973
    %v1162 = vpack.c.b16 %v978, %v974
    %v1163 = vpack.c.b16 %v979, %v975
    %v1164 = vpack.c.b16 %v984, %v980
    %v1165 = vpack.c.b16 %v985, %v981
    %v1166 = vpack.c.b16 %v986, %v982
    %v1167 = vpack.c.b16 %v987, %v983
    %v1168 = vpack.c.b16 %v992, %v988
    %v1169 = vpack.c.b16 %v993, %v989
    %v1170 = vpack.c.b16 %v994, %v990
    %v1171 = vpack.c.b16 %v995, %v991
    %v1172 = vpack.c.b16 %v1000, %v996
    %v1173 = vpack.c.b16 %v1001, %v997
    %v1174 = vpack.c.b16 %v1002, %v998
    %v1175 = vpack.c.b16 %v1003, %v999
    %v1176 = vpack.c.b16 %v1008, %v1004
    %v1177 = vpack.c.b16 %v1009, %v1005
    %v1178 = vpack.c.b16 %v1010, %v1006
    %v1179 = vpack.c.b16 %v1011, %v1007
    %v1180 = vpack.c.b16 %v1016, %v1012
    %v1181 = vpack.c.b16 %v1017, %v1013
    %v1182 = vpack.c.b16 %v1018, %v1014
    %v1183 = vpack.c.b16 %v1019, %v1015
    %v1184 = vpack.c.b16 %v1024, %v1020
    %v1185 = vpack.c.b16 %v1025, %v1021
    %v1186 = vpack.c.b16 %v1026, %v1022
    %v1187 = vpack.c.b16 %v1027, %v1023
    %v1188 = vpack.c.b16 %v1032, %v1028
    %v1189 = vpack.c.b16 %v1033, %v1029
    %v1190 = vpack.c.b16 %v1034, %v1030
    %v1191 = vpack.c.b16 %v1035, %v1031
    %v1192 = vpack.c.b16 %v1040, %v1036
    %v1193 = vpack.c.b16 %v1041, %v1037
    %v1194 = vpack.c.b16 %v1042, %v1038
    %v1195 = vpack.c.b16 %v1043, %v1039
    %v1196 = vpack.c.b16 %v1048, %v1044
    %v1197 = vpack.c.b16 %v1049, %v1045
    %v1198 = vpack.c.b16 %v1050, %v1046
    %v1199 = vpack.c.b16 %v1051, %v1047
    %v1200 = vpack.c.b16 %v1056, %v1052
    %v1201 = vpack.c.b16 %v1057, %v1053
    %v1202 = vpack.c.b16 %v1058, %v1054
    %v1203 = vpack.c.b16 %v1059, %v1055
    %v1204 = vpack.c.b16 %v1064, %v1060
    %v1205 = vpack.c.b16 %v1065, %v1061
    %v1206 = vpack.c.b16 %v1066, %v1062
    %v1207 = vpack.c.b16 %v1067, %v1063
    %v1208 = vpack.c.b16 %v1072, %v1068
    %v1209 = vpack.c.b16 %v1073, %v1069
    %v1210 = vpack.c.b16 %v1074, %v1070
    %v1211 = vpack.c.b16 %v1075, %v1071
    %v1212 = vpack.c.b16 %v1080, %v1076
    %v1213 = vpack.c.b16 %v1081, %v1077
    %v1214 = vpack.c.b16 %v1082, %v1078
    %v1215 = vpack.c.b16 %v1083, %v1079
    %v1216 = vpack.c.b16 %v1088, %v1084
    %v1217 = vpack.c.b16 %v1089, %v1085
    %v1218 = vpack.c.b16 %v1090, %v1086
    %v1219 = vpack.c.b16 %v1091, %v1087
    %1348 = vmatprep.subr.bf16.mxu0 %v1121
    %1349 = vmatpush1.bf16.msra.mxu0 %v1120
    %1350 = vmatprep.subr.bf16.mxu0 %v1117
    %1351 = vmatpush1.bf16.msra.mxu0 %v1116
    %1352 = vmatprep.subr.bf16.mxu0 %v1113
    %1353 = vmatpush1.bf16.msra.mxu0 %v1112
    %1354 = vmatprep.subr.bf16.mxu0 %v1109
    %1355 = vmatpush1.bf16.msra.mxu0 %v1108
    %1356 = vmatprep.subr.bf16.mxu0 %v1105
    %1357 = vmatpush1.bf16.msra.mxu0 %v1104
    %1358 = vmatprep.subr.bf16.mxu0 %v1101
    %1359 = vmatpush1.bf16.msra.mxu0 %v1100
    %1360 = vmatprep.subr.bf16.mxu0 %v1097
    %1361 = vmatpush1.bf16.msra.mxu0 %v1096
    %1362 = vmatprep.subr.bf16.mxu0 %v1093
    %1363 = vmatpush1.bf16.msra.mxu0 %v1092
    %1364 = vmatprep.subr.bf16.mxu0 %v1153
    %1365 = vmatpush2.bf16.msra.mxu0 %v1152
    %1366 = vmatprep.subr.bf16.mxu0 %v1149
    %1367 = vmatpush2.bf16.msra.mxu0 %v1148
    %1368 = vmatprep.subr.bf16.mxu0 %v1145
    %1369 = vmatpush2.bf16.msra.mxu0 %v1144
    %1370 = vmatprep.subr.bf16.mxu0 %v1141
    %1371 = vmatpush2.bf16.msra.mxu0 %v1140
    %1372 = vmatprep.subr.bf16.mxu0 %v1137
    %1373 = vmatpush2.bf16.msra.mxu0 %v1136
    %1374 = vmatprep.subr.bf16.mxu0 %v1133
    %1375 = vmatpush2.bf16.msra.mxu0 %v1132
    %1376 = vmatprep.subr.bf16.mxu0 %v1129
    %1377 = vmatpush2.bf16.msra.mxu0 %v1128
    %1378 = vmatprep.subr.bf16.mxu0 %v1125
    %1379 = vmatpush2.bf16.msra.mxu0 %v1124
    %1380 = vmatprep.mubr.bf16.mxu0 %v556
    %1381 = vmatmul.mubr.bf16.gmra.mxu0 %v555
    %v1382 = vpop.f32.mrf.mxu0
    %v1383 = vadd.f32 %v691, %v1382
    %v1384 = vpop.f32.mrf.mxu0
    %v1385 = vadd.f32 %v695, %v1384
    %v1386 = vpop.f32.mrf.mxu0
    %v1387 = vpop.f32.mrf.mxu0
    %1388 = vdwg.mxu0
    %1389 = vmatprep.subr.bf16.mxu0 %v1185
    %1390 = vmatpush1.bf16.msra.mxu0 %v1184
    %1391 = vmatprep.subr.bf16.mxu0 %v1181
    %1392 = vmatpush1.bf16.msra.mxu0 %v1180
    %1393 = vmatprep.subr.bf16.mxu0 %v1177
    %1394 = vmatpush1.bf16.msra.mxu0 %v1176
    %1395 = vmatprep.subr.bf16.mxu0 %v1173
    %1396 = vmatpush1.bf16.msra.mxu0 %v1172
    %1397 = vmatprep.subr.bf16.mxu0 %v1169
    %1398 = vmatpush1.bf16.msra.mxu0 %v1168
    %1399 = vmatprep.subr.bf16.mxu0 %v1165
    %1400 = vmatpush1.bf16.msra.mxu0 %v1164
    %1401 = vmatprep.subr.bf16.mxu0 %v1161
    %1402 = vmatpush1.bf16.msra.mxu0 %v1160
    %1403 = vmatprep.subr.bf16.mxu0 %v1157
    %1404 = vmatpush1.bf16.msra.mxu0 %v1156
    %1405 = vmatprep.subr.bf16.mxu0 %v1217
    %1406 = vmatpush2.bf16.msra.mxu0 %v1216
    %1407 = vmatprep.subr.bf16.mxu0 %v1213
    %1408 = vmatpush2.bf16.msra.mxu0 %v1212
    %1409 = vmatprep.subr.bf16.mxu0 %v1209
    %1410 = vmatpush2.bf16.msra.mxu0 %v1208
    %1411 = vmatprep.subr.bf16.mxu0 %v1205
    %1412 = vmatpush2.bf16.msra.mxu0 %v1204
    %1413 = vmatprep.subr.bf16.mxu0 %v1201
    %1414 = vmatpush2.bf16.msra.mxu0 %v1200
    %1415 = vmatprep.subr.bf16.mxu0 %v1197
    %1416 = vmatpush2.bf16.msra.mxu0 %v1196
    %1417 = vmatprep.subr.bf16.mxu0 %v1193
    %1418 = vmatpush2.bf16.msra.mxu0 %v1192
    %1419 = vmatprep.subr.bf16.mxu0 %v1189
    %1420 = vmatpush2.bf16.msra.mxu0 %v1188
    %1421 = vmatprep.mubr.bf16.mxu0 %v558
    %1422 = vmatmul.mubr.bf16.gmra.mxu0 %v557
    %v1423 = vpop.f32.mrf.mxu0
    %v1424 = vadd.f32 %v1383, %v1423
    %v1425 = vpop.f32.mrf.mxu0
    %v1426 = vadd.f32 %v1385, %v1425
    %v1427 = vpop.f32.mrf.mxu0
    %v1428 = vpop.f32.mrf.mxu0
    %1429 = vdwg.mxu0
    %1430 = vmatprep.subr.bf16.mxu0 %v1123
    %1431 = vmatpush1.bf16.msra.mxu0 %v1122
    %1432 = vmatprep.subr.bf16.mxu0 %v1119
    %1433 = vmatpush1.bf16.msra.mxu0 %v1118
    %1434 = vmatprep.subr.bf16.mxu0 %v1115
    %1435 = vmatpush1.bf16.msra.mxu0 %v1114
    %1436 = vmatprep.subr.bf16.mxu0 %v1111
    %1437 = vmatpush1.bf16.msra.mxu0 %v1110
    %1438 = vmatprep.subr.bf16.mxu0 %v1107
    %1439 = vmatpush1.bf16.msra.mxu0 %v1106
    %1440 = vmatprep.subr.bf16.mxu0 %v1103
    %1441 = vmatpush1.bf16.msra.mxu0 %v1102
    %1442 = vmatprep.subr.bf16.mxu0 %v1099
    %1443 = vmatpush1.bf16.msra.mxu0 %v1098
    %1444 = vmatprep.subr.bf16.mxu0 %v1095
    %1445 = vmatpush1.bf16.msra.mxu0 %v1094
    %1446 = vmatprep.subr.bf16.mxu0 %v1155
    %1447 = vmatpush2.bf16.msra.mxu0 %v1154
    %1448 = vmatprep.subr.bf16.mxu0 %v1151
    %1449 = vmatpush2.bf16.msra.mxu0 %v1150
    %1450 = vmatprep.subr.bf16.mxu0 %v1147
    %1451 = vmatpush2.bf16.msra.mxu0 %v1146
    %1452 = vmatprep.subr.bf16.mxu0 %v1143
    %1453 = vmatpush2.bf16.msra.mxu0 %v1142
    %1454 = vmatprep.subr.bf16.mxu0 %v1139
    %1455 = vmatpush2.bf16.msra.mxu0 %v1138
    %1456 = vmatprep.subr.bf16.mxu0 %v1135
    %1457 = vmatpush2.bf16.msra.mxu0 %v1134
    %1458 = vmatprep.subr.bf16.mxu0 %v1131
    %1459 = vmatpush2.bf16.msra.mxu0 %v1130
    %1460 = vmatprep.subr.bf16.mxu0 %v1127
    %1461 = vmatpush2.bf16.msra.mxu0 %v1126
    %1462 = vmatprep.mubr.bf16.mxu0 %v556
    %1463 = vmatmul.mubr.bf16.gmra.mxu0 %v555
    %v1464 = vpop.f32.mrf.mxu0
    %v1465 = vadd.f32 %v699, %v1464
    %v1466 = vpop.f32.mrf.mxu0
    %v1467 = vadd.f32 %v703, %v1466
    %v1468 = vpop.f32.mrf.mxu0
    %v1469 = vpop.f32.mrf.mxu0
    %1470 = vdwg.mxu0
    %1471 = vmatprep.subr.bf16.mxu0 %v1187
    %1472 = vmatpush1.bf16.msra.mxu0 %v1186
    %1473 = vmatprep.subr.bf16.mxu0 %v1183
    %1474 = vmatpush1.bf16.msra.mxu0 %v1182
    %1475 = vmatprep.subr.bf16.mxu0 %v1179
    %1476 = vmatpush1.bf16.msra.mxu0 %v1178
    %1477 = vmatprep.subr.bf16.mxu0 %v1175
    %1478 = vmatpush1.bf16.msra.mxu0 %v1174
    %1479 = vmatprep.subr.bf16.mxu0 %v1171
    %1480 = vmatpush1.bf16.msra.mxu0 %v1170
    %1481 = vmatprep.subr.bf16.mxu0 %v1167
    %1482 = vmatpush1.bf16.msra.mxu0 %v1166
    %1483 = vmatprep.subr.bf16.mxu0 %v1163
    %1484 = vmatpush1.bf16.msra.mxu0 %v1162
    %1485 = vmatprep.subr.bf16.mxu0 %v1159
    %1486 = vmatpush1.bf16.msra.mxu0 %v1158
    %1487 = vmatprep.subr.bf16.mxu0 %v1219
    %1488 = vmatpush2.bf16.msra.mxu0 %v1218
    %1489 = vmatprep.subr.bf16.mxu0 %v1215
    %1490 = vmatpush2.bf16.msra.mxu0 %v1214
    %1491 = vmatprep.subr.bf16.mxu0 %v1211
    %1492 = vmatpush2.bf16.msra.mxu0 %v1210
    %1493 = vmatprep.subr.bf16.mxu0 %v1207
    %1494 = vmatpush2.bf16.msra.mxu0 %v1206
    %1495 = vmatprep.subr.bf16.mxu0 %v1203
    %1496 = vmatpush2.bf16.msra.mxu0 %v1202
    %1497 = vmatprep.subr.bf16.mxu0 %v1199
    %1498 = vmatpush2.bf16.msra.mxu0 %v1198
    %1499 = vmatprep.subr.bf16.mxu0 %v1195
    %1500 = vmatpush2.bf16.msra.mxu0 %v1194
    %1501 = vmatprep.subr.bf16.mxu0 %v1191
    %1502 = vmatpush2.bf16.msra.mxu0 %v1190
    %1503 = vmatprep.mubr.bf16.mxu0 %v558
    %1504 = vmatmul.mubr.bf16.gmra.mxu0 %v557
    %v1505 = vpop.f32.mrf.mxu0
    %v1506 = vadd.f32 %v1465, %v1505
    %v1507 = vpop.f32.mrf.mxu0
    %v1508 = vadd.f32 %v1467, %v1507
    %v1509 = vpop.f32.mrf.mxu0
    %v1510 = vpop.f32.mrf.mxu0
    %1511 = vdwg.mxu0
    %v1512 = vmax.f32 %v1424, 0.0
    %v1513 = vmax.f32 %v1426, 0.0
    %v1514 = vmax.f32 %v1506, 0.0
    %v1515 = vmax.f32 %v1508, 0.0
    %v1516 = vpack.c.bf16 %v1512, %v1512
    %v1517 = vpack.c.bf16 %v1513, %v1513
    %v1518 = vpack.c.bf16 %v1514, %v1514
    %v1519 = vpack.c.bf16 %v1515, %v1515
    %v1520 = vld [vmem:[#allocation5 + $0x20] sm:$0xf]
    %v1521 = vld [vmem:[#allocation5 + $0x44] sm:$0xf]
    %v1522 = vld [vmem:[#allocation5 + $0x68] sm:$0xf]
    %v1523 = vld [vmem:[#allocation5 + $0x8c] sm:$0xf]
    %v1524 = vld [vmem:[#allocation5 + $0xb0] sm:$0xf]
    %v1525 = vld [vmem:[#allocation5 + $0xd4] sm:$0xf]
    %v1526 = vld [vmem:[#allocation5 + $0xf8] sm:$0xf]
    %v1527 = vld [vmem:[#allocation5 + $0x11c] sm:$0xf]
    %v1528 = vld [vmem:[#allocation5 + $0x140] sm:$0xf]
    %v1529 = vld [vmem:[#allocation5 + $0x164] sm:$0xf]
    %v1530 = vld [vmem:[#allocation5 + $0x188] sm:$0xf]
    %v1531 = vld [vmem:[#allocation5 + $0x1ac] sm:$0xf]
    %v1532 = vld [vmem:[#allocation5 + $0x1d0] sm:$0xf]
    %v1533 = vld [vmem:[#allocation5 + $0x1f4] sm:$0xf]
    %v1534 = vld [vmem:[#allocation5 + $0x218] sm:$0xf]
    %v1535 = vld [vmem:[#allocation5 + $0x23c] sm:$0xf]
    %v1536 = vld [vmem:[#allocation5 + $0x260] sm:$0xf]
    %v1537 = vld [vmem:[#allocation5 + $0x284] sm:$0xf]
    %v1538 = vld [vmem:[#allocation5 + $0x2a8] sm:$0xf]
    %v1539 = vld [vmem:[#allocation5 + $0x2cc] sm:$0xf]
    %v1540 = vld [vmem:[#allocation5 + $0x2f0] sm:$0xf]
    %v1541 = vld [vmem:[#allocation5 + $0x314] sm:$0xf]
    %v1542 = vld [vmem:[#allocation5 + $0x338] sm:$0xf]
    %v1543 = vld [vmem:[#allocation5 + $0x35c] sm:$0xf]
    %v1544 = vld [vmem:[#allocation5 + $0x380] sm:$0xf]
    %v1545 = vld [vmem:[#allocation5 + $0x3a4] sm:$0xf]
    %v1546 = vld [vmem:[#allocation5 + $0x3c8] sm:$0xf]
    %v1547 = vld [vmem:[#allocation5 + $0x3ec] sm:$0xf]
    %v1548 = vld [vmem:[#allocation5 + $0x410] sm:$0xf]
    %v1549 = vld [vmem:[#allocation5 + $0x434] sm:$0xf]
    %v1550 = vld [vmem:[#allocation5 + $0x458] sm:$0xf]
    %v1551 = vld [vmem:[#allocation5 + $0x47c] sm:$0xf]
    %v1552 = vld [vmem:[#allocation5 + $0x4a0] sm:$0xf]
    %v1553 = vld [vmem:[#allocation5 + $0x4c4] sm:$0xf]
    %v1554 = vld [vmem:[#allocation5 + $0x4e8] sm:$0xf]
    %v1555 = vld [vmem:[#allocation5 + $0x50c] sm:$0xf]
    %v1556 = vld [vmem:[#allocation5 + $0x530] sm:$0xf]
    %v1557 = vld [vmem:[#allocation5 + $0x554] sm:$0xf]
    %v1558 = vld [vmem:[#allocation5 + $0x578] sm:$0xf]
    %v1559 = vld [vmem:[#allocation5 + $0x59c] sm:$0xf]
    %v1560 = vld [vmem:[#allocation5 + $0x5c0] sm:$0xf]
    %v1561 = vld [vmem:[#allocation5 + $0x5e4] sm:$0xf]
    %v1562 = vld [vmem:[#allocation5 + $0x608] sm:$0xf]
    %v1563 = vld [vmem:[#allocation5 + $0x62c] sm:$0xf]
    %v1564 = vld [vmem:[#allocation5 + $0x650] sm:$0xf]
    %v1565 = vld [vmem:[#allocation5 + $0x674] sm:$0xf]
    %v1566 = vld [vmem:[#allocation5 + $0x698] sm:$0xf]
    %v1567 = vld [vmem:[#allocation5 + $0x6bc] sm:$0xf]
    %v1568 = vld [vmem:[#allocation5 + $0x6e0] sm:$0xf]
    %v1569 = vld [vmem:[#allocation5 + $0x704] sm:$0xf]
    %v1570 = vld [vmem:[#allocation5 + $0x728] sm:$0xf]
    %v1571 = vld [vmem:[#allocation5 + $0x74c] sm:$0xf]
    %v1572 = vld [vmem:[#allocation5 + $0x770] sm:$0xf]
    %v1573 = vld [vmem:[#allocation5 + $0x794] sm:$0xf]
    %v1574 = vld [vmem:[#allocation5 + $0x7b8] sm:$0xf]
    %v1575 = vld [vmem:[#allocation5 + $0x7dc] sm:$0xf]
    %v1576 = vld [vmem:[#allocation5 + $0x800] sm:$0xf]
    %v1577 = vld [vmem:[#allocation5 + $0x824] sm:$0xf]
    %v1578 = vld [vmem:[#allocation5 + $0x848] sm:$0xf]
    %v1579 = vld [vmem:[#allocation5 + $0x86c] sm:$0xf]
    %v1580 = vld [vmem:[#allocation5 + $0x890] sm:$0xf]
    %v1581 = vld [vmem:[#allocation5 + $0x8b4] sm:$0xf]
    %v1582 = vld [vmem:[#allocation5 + $0x8d8] sm:$0xf]
    %v1583 = vld [vmem:[#allocation5 + $0x8fc] sm:$0xf]
    %v1584 = vlaneseq
    %v1585 = vshrl.u32 %v1584, 7
    %v1586 = vsub.s32 0, %v1585
    %v1587 = vrot.slane %v56, %v1586
    %v1652 = vunpack.c.l.b16 %v1520
    %v1653 = vunpack.c.l.b16 %v1521
    %v1654 = vunpack.c.l.b16 %v1522
    %v1655 = vunpack.c.l.b16 %v1523
    %v1656 = vunpack.c.l.b16 %v1524
    %v1657 = vunpack.c.l.b16 %v1525
    %v1658 = vunpack.c.l.b16 %v1526
    %v1659 = vunpack.c.l.b16 %v1527
    %v1660 = vunpack.c.l.b16 %v1528
    %v1661 = vunpack.c.l.b16 %v1529
    %v1662 = vunpack.c.l.b16 %v1530
    %v1663 = vunpack.c.l.b16 %v1531
    %v1664 = vunpack.c.l.b16 %v1532
    %v1665 = vunpack.c.l.b16 %v1533
    %v1666 = vunpack.c.l.b16 %v1534
    %v1667 = vunpack.c.l.b16 %v1535
    %v1668 = vunpack.c.l.b16 %v1536
    %v1669 = vunpack.c.l.b16 %v1537
    %v1670 = vunpack.c.l.b16 %v1538
    %v1671 = vunpack.c.l.b16 %v1539
    %v1672 = vunpack.c.l.b16 %v1540
    %v1673 = vunpack.c.l.b16 %v1541
    %v1674 = vunpack.c.l.b16 %v1542
    %v1675 = vunpack.c.l.b16 %v1543
    %v1676 = vunpack.c.l.b16 %v1544
    %v1677 = vunpack.c.l.b16 %v1545
    %v1678 = vunpack.c.l.b16 %v1546
    %v1679 = vunpack.c.l.b16 %v1547
    %v1680 = vunpack.c.l.b16 %v1548
    %v1681 = vunpack.c.l.b16 %v1549
    %v1682 = vunpack.c.l.b16 %v1550
    %v1683 = vunpack.c.l.b16 %v1551
    %v1684 = vunpack.c.l.b16 %v1552
    %v1685 = vunpack.c.l.b16 %v1553
    %v1686 = vunpack.c.l.b16 %v1554
    %v1687 = vunpack.c.l.b16 %v1555
    %v1688 = vunpack.c.l.b16 %v1556
    %v1689 = vunpack.c.l.b16 %v1557
    %v1690 = vunpack.c.l.b16 %v1558
    %v1691 = vunpack.c.l.b16 %v1559
    %v1692 = vunpack.c.l.b16 %v1560
    %v1693 = vunpack.c.l.b16 %v1561
    %v1694 = vunpack.c.l.b16 %v1562
    %v1695 = vunpack.c.l.b16 %v1563
    %v1696 = vunpack.c.l.b16 %v1564
    %v1697 = vunpack.c.l.b16 %v1565
    %v1698 = vunpack.c.l.b16 %v1566
    %v1699 = vunpack.c.l.b16 %v1567
    %v1700 = vunpack.c.l.b16 %v1568
    %v1701 = vunpack.c.l.b16 %v1569
    %v1702 = vunpack.c.l.b16 %v1570
    %v1703 = vunpack.c.l.b16 %v1571
    %v1704 = vunpack.c.l.b16 %v1572
    %v1705 = vunpack.c.l.b16 %v1573
    %v1706 = vunpack.c.l.b16 %v1574
    %v1707 = vunpack.c.l.b16 %v1575
    %v1708 = vunpack.c.l.b16 %v1576
    %v1709 = vunpack.c.l.b16 %v1577
    %v1710 = vunpack.c.l.b16 %v1578
    %v1711 = vunpack.c.l.b16 %v1579
    %v1712 = vunpack.c.l.b16 %v1580
    %v1713 = vunpack.c.l.b16 %v1581
    %v1714 = vunpack.c.l.b16 %v1582
    %v1715 = vunpack.c.l.b16 %v1583
    %v1716 = vpack.c.b16 %v1653, %v1652
    %v1717 = vpack.c.b16 %v1655, %v1654
    %v1718 = vpack.c.b16 %v1657, %v1656
    %v1719 = vpack.c.b16 %v1659, %v1658
    %v1720 = vpack.c.b16 %v1661, %v1660
    %v1721 = vpack.c.b16 %v1663, %v1662
    %v1722 = vpack.c.b16 %v1665, %v1664
    %v1723 = vpack.c.b16 %v1667, %v1666
    %v1724 = vpack.c.b16 %v1669, %v1668
    %v1725 = vpack.c.b16 %v1671, %v1670
    %v1726 = vpack.c.b16 %v1673, %v1672
    %v1727 = vpack.c.b16 %v1675, %v1674
    %v1728 = vpack.c.b16 %v1677, %v1676
    %v1729 = vpack.c.b16 %v1679, %v1678
    %v1730 = vpack.c.b16 %v1681, %v1680
    %v1731 = vpack.c.b16 %v1683, %v1682
    %v1732 = vpack.c.b16 %v1685, %v1684
    %v1733 = vpack.c.b16 %v1687, %v1686
    %v1734 = vpack.c.b16 %v1689, %v1688
    %v1735 = vpack.c.b16 %v1691, %v1690
    %v1736 = vpack.c.b16 %v1693, %v1692
    %v1737 = vpack.c.b16 %v1695, %v1694
    %v1738 = vpack.c.b16 %v1697, %v1696
    %v1739 = vpack.c.b16 %v1699, %v1698
    %v1740 = vpack.c.b16 %v1701, %v1700
    %v1741 = vpack.c.b16 %v1703, %v1702
    %v1742 = vpack.c.b16 %v1705, %v1704
    %v1743 = vpack.c.b16 %v1707, %v1706
    %v1744 = vpack.c.b16 %v1709, %v1708
    %v1745 = vpack.c.b16 %v1711, %v1710
    %v1746 = vpack.c.b16 %v1713, %v1712
    %v1747 = vpack.c.b16 %v1715, %v1714
    %1780 = vmatprep.subr.bf16.mxu0 0
    %1781 = vmatpush1.bf16.msra.mxu0 %v1723
    %1782 = vmatprep.subr.bf16.mxu0 0
    %1783 = vmatpush1.bf16.msra.mxu0 %v1722
    %1784 = vmatprep.subr.bf16.mxu0 0
    %1785 = vmatpush1.bf16.msra.mxu0 %v1721
    %1786 = vmatprep.subr.bf16.mxu0 0
    %1787 = vmatpush1.bf16.msra.mxu0 %v1720
    %1788 = vmatprep.subr.bf16.mxu0 0
    %1789 = vmatpush1.bf16.msra.mxu0 %v1719
    %1790 = vmatprep.subr.bf16.mxu0 0
    %1791 = vmatpush1.bf16.msra.mxu0 %v1718
    %1792 = vmatprep.subr.bf16.mxu0 0
    %1793 = vmatpush1.bf16.msra.mxu0 %v1717
    %1794 = vmatprep.subr.bf16.mxu0 0
    %1795 = vmatpush1.bf16.msra.mxu0 %v1716
    %1796 = vmatprep.subr.bf16.mxu0 0
    %1797 = vmatpush2.bf16.msra.mxu0 %v1731
    %1798 = vmatprep.subr.bf16.mxu0 0
    %1799 = vmatpush2.bf16.msra.mxu0 %v1730
    %1800 = vmatprep.subr.bf16.mxu0 0
    %1801 = vmatpush2.bf16.msra.mxu0 %v1729
    %1802 = vmatprep.subr.bf16.mxu0 0
    %1803 = vmatpush2.bf16.msra.mxu0 %v1728
    %1804 = vmatprep.subr.bf16.mxu0 0
    %1805 = vmatpush2.bf16.msra.mxu0 %v1727
    %1806 = vmatprep.subr.bf16.mxu0 0
    %1807 = vmatpush2.bf16.msra.mxu0 %v1726
    %1808 = vmatprep.subr.bf16.mxu0 0
    %1809 = vmatpush2.bf16.msra.mxu0 %v1725
    %1810 = vmatprep.subr.bf16.mxu0 0
    %1811 = vmatpush2.bf16.msra.mxu0 %v1724
    %1812 = vmatprep.mubr.bf16.mxu0 %v1517
    %1813 = vmatmul.mubr.bf16.gmra.mxu0 %v1516
    %v1814 = vpop.f32.mrf.mxu0
    %v1815 = vadd.f32 %v1587, %v1814
    %v1816 = vpop.f32.mrf.mxu0
    %v1817 = vpop.f32.mrf.mxu0
    %v1818 = vpop.f32.mrf.mxu0
    %1819 = vdwg.mxu0
    %1820 = vmatprep.subr.bf16.mxu0 0
    %1821 = vmatpush1.bf16.msra.mxu0 %v1739
    %1822 = vmatprep.subr.bf16.mxu0 0
    %1823 = vmatpush1.bf16.msra.mxu0 %v1738
    %1824 = vmatprep.subr.bf16.mxu0 0
    %1825 = vmatpush1.bf16.msra.mxu0 %v1737
    %1826 = vmatprep.subr.bf16.mxu0 0
    %1827 = vmatpush1.bf16.msra.mxu0 %v1736
    %1828 = vmatprep.subr.bf16.mxu0 0
    %1829 = vmatpush1.bf16.msra.mxu0 %v1735
    %1830 = vmatprep.subr.bf16.mxu0 0
    %1831 = vmatpush1.bf16.msra.mxu0 %v1734
    %1832 = vmatprep.subr.bf16.mxu0 0
    %1833 = vmatpush1.bf16.msra.mxu0 %v1733
    %1834 = vmatprep.subr.bf16.mxu0 0
    %1835 = vmatpush1.bf16.msra.mxu0 %v1732
    %1836 = vmatprep.subr.bf16.mxu0 0
    %1837 = vmatpush2.bf16.msra.mxu0 %v1747
    %1838 = vmatprep.subr.bf16.mxu0 0
    %1839 = vmatpush2.bf16.msra.mxu0 %v1746
    %1840 = vmatprep.subr.bf16.mxu0 0
    %1841 = vmatpush2.bf16.msra.mxu0 %v1745
    %1842 = vmatprep.subr.bf16.mxu0 0
    %1843 = vmatpush2.bf16.msra.mxu0 %v1744
    %1844 = vmatprep.subr.bf16.mxu0 0
    %1845 = vmatpush2.bf16.msra.mxu0 %v1743
    %1846 = vmatprep.subr.bf16.mxu0 0
    %1847 = vmatpush2.bf16.msra.mxu0 %v1742
    %1848 = vmatprep.subr.bf16.mxu0 0
    %1849 = vmatpush2.bf16.msra.mxu0 %v1741
    %1850 = vmatprep.subr.bf16.mxu0 0
    %1851 = vmatpush2.bf16.msra.mxu0 %v1740
    %1852 = vmatprep.mubr.bf16.mxu0 %v1519
    %1853 = vmatmul.mubr.bf16.gmra.mxu0 %v1518
    %v1854 = vpop.f32.mrf.mxu0
    %v1855 = vadd.f32 %v1815, %v1854
    %v1856 = vpop.f32.mrf.mxu0
    %v1857 = vpop.f32.mrf.mxu0
    %v1858 = vpop.f32.mrf.mxu0
    %1859 = vdwg.mxu0
    %v1860 = vxor.u32 %v1855, 2147483648
    %v1861 = vmul.f32 %v1860, 1.442695
    %v1862 = vpow.pop %v1861
    %v1863 = vadd.f32 %v1862, 1.0
    %v1864 = vrcp.pop %v1863
    %v1865 = vmul.f32 1.0, %v1864
    %1866 = vst [vmem:[#allocation8] sm:$0xff] %v1865
    // Predicated region
    $region26: #{tpu_custom_call.1} parent=1 // pred_check
      _
    $region27: #{tpu_custom_call.1} parent=1 // pred_check_branch
      %1868 = sbr.rel (0) target = $region29
    $region28: #{tpu_custom_call.1} parent=1 // pred_region
      %s1870 = ssub.s32 128, 128
      %1871 = vsyncadd [#allocation4], %s1870
      %s1873 = sshll.u32 [#allocation8], 4
      %s1874 = int_to_ptr.vmem [resolvable:$true] %s1873
      %1876 = dma.vmem_to_hbm [thread:$0]  %s1874, 128, %s3, [#allocation4]
    $region29: #{tpu_custom_call.1} parent=1 // pred_fallthru
      _
    // Predicated region
    $region30: #{tpu_custom_call.1} parent=1 // pred_check
      _
    $region31: #{tpu_custom_call.1} parent=1 // pred_check_branch
      %1878 = sbr.rel (0) target = $region33
    $region32: #{tpu_custom_call.1} parent=1 // pred_region
      %1879 = dma.done [#allocation4], 128
    $region33: #{tpu_custom_call.1} parent=1 // pred_fallthru
      _
    %1880 = vsyncpa [#allocation3], 1
    %1881 = vsyncpa [#allocation6], 1
    %1882 = vsyncpa [#allocation4], 1

</llo_original>
